<compile_context>
chip_gen: v5e
topology: v5e:2x2
jax: 0.10.0
libtpu: 0.0.40
codegen_flags: <defaults>
</compile_context>

<pallas_src>
import math
import numpy as np
import jax
import jax.numpy as jnp
from jax import lax
from jax.experimental import pallas as pl
from jax.experimental.pallas import tpu as pltpu

# ----------------------------- small config ---------------------------------
VOCAB     = 50
VOCAB_PAD = 128                          # lane-dense output head
HIDDEN    = 32
D_INNER   = 64
NB_HEADS  = 4
HEAD_DIM  = HIDDEN // NB_HEADS           # 8
NB_LAYERS = 2
ATTN_SPAN = 8                            # == cache size (adaptive span off)
BATCH     = 2
BLOCK     = 8                            # sequence block size M
SEQ_ALL   = ATTN_SPAN + BLOCK            # L = cache + current
COLS      = NB_HEADS * BATCH * SEQ_ALL   # 128 dense score columns (head,b,pos)

# TODO(synk): the in-kernel cache update assumes cache_size == block_size (true
# here); the general cache_size > block_size path also needs old cache rows.
assert ATTN_SPAN == BLOCK


# ----------------------------- helpers ---------------------------------------
def _add_layernorm(x, y, g, b):
    # LayerNorm(x + y), eps=1e-5, biased variance (matches nn.LayerNorm)
    s = x + y
    mu = jnp.mean(s, axis=-1, keepdims=True)
    var = jnp.mean(jnp.square(s - mu), axis=-1, keepdims=True)
    return (s - mu) * lax.rsqrt(var + 1e-5) * g + b


# ----------------------------- fused kernel ---------------------------------
def _fused_forward_kernel(valid_ref,          # (1,) int32 SMEM: valid cache rows
                          h_ref,              # [B*M, H]       f32
                          cache_ref,          # [NL, B*span,H] f32 (aliased out)
                          wq_ref, wk_ref, wv_ref, wo_ref,   # [NL, H, H]  bf16
                          wpe_ref,            # [M*H, COLS]    bf16 (key_pe+skew)
                          ffw1_ref,           # [NL, H, DI]    bf16
                          ffb1_ref,           # [NL, 1, DI]    f32
                          ffw2_ref,           # [NL, DI, H]    bf16
                          ffb2_ref,           # [NL, 1, H]     f32
                          ln_ref,             # [NL, 4, H]     f32
                          headmask_ref,       # [COLS, H]      f32 block-diag mask
                          qexpmask_ref,       # [B*M, M*H]     f32 row-of-block mask
                          bandbias_ref,       # [B*M, COLS]    f32 0 / -1e30
                          cpos_ref,           # [1, COLS]      f32 cache position
                          outw_ref,           # [H, VOCAB_PAD] bf16
                          outb_ref,           # [1, VOCAB_PAD] f32 (-1e30 pads)
                          logp_ref,           # OUT [B*M, VOCAB_PAD] f32
                          cacheout_ref):      # OUT [NL, B*span, H]  f32
    f32 = jnp.float32
    bf16 = jnp.bfloat16
    BM, H = h_ref.shape
    inv_sqrt_d = 1.0 / math.sqrt(HEAD_DIM)

    # ---- hoisted, layer-independent quantities (computed once per call) -----
    head_mask = headmask_ref[...]                  # [COLS, H] f32
    head_mask_bf = head_mask.astype(bf16)          # segment-sum matmul operand
    qexp_mask = qexpmask_ref[...]                  # [BM, M*H] f32
    wpe_bf = wpe_ref[...]                          # [M*H, COLS] bf16

    # cache-validity mask (replaces the fragile `score == 0` data mask of the
    # reference; -1e6 magnitude matches it, keeps softmax finite on empty cache)
    valid = valid_ref[0].astype(f32)
    penalty = jnp.where(cpos_ref[...] < (ATTN_SPAN - valid), -1e6, 0.0)  # [1,COLS]
    bias = bandbias_ref[...] + penalty                                    # [BM,COLS]

    x = h_ref[...]                                                        # [BM, H]

    for l in range(NB_LAYERS):
        # next cache for layer l == layer-l input block (cache_size == M)
        cacheout_ref[l] = x

        x_bf = x.astype(bf16)
        h_all_bf = jnp.concatenate([cache_ref[l].astype(bf16), x_bf], axis=0)

        # ---- Q / K / V projections (bf16 MXU, f32 accumulation) -------------
        kmat = jnp.dot(h_all_bf, wk_ref[l], preferred_element_type=f32)  # [2BM,H]
        vmat = jnp.dot(h_all_bf, wv_ref[l], preferred_element_type=f32)  # [2BM,H]
        q    = jnp.dot(x_bf,     wq_ref[l], preferred_element_type=f32)  # [BM, H]

        # ---- block-diagonal (per-head) K / V in the dense column layout -----
        # column = head * (B*L) + h_all_row ; head mask keeps only that head's
        # H-slice, so heads never leave the lane-fused layout.
        kbdt_bf = (jnp.concatenate([kmat] * NB_HEADS, axis=0)
                   * head_mask).astype(bf16)                             # [COLS,H]
        vbd_bf  = (jnp.concatenate([vmat] * NB_HEADS, axis=0)
                   * head_mask).astype(bf16)                             # [COLS,H]

        # content scores: one matmul, contraction over H (per-head via mask)
        q_bf = q.astype(bf16)
        s = lax.dot_general(q_bf, kbdt_bf, (((1,), (1,)), ((), ())),
                            preferred_element_type=f32)                  # [BM,COLS]

        # positional scores, already skewed into the dense column layout,
        # via ONE matmul against the init-time key_pe/skew tensor.
        q_exp_bf = (jnp.concatenate([q] * BLOCK, axis=1)
                    * qexp_mask).astype(bf16)                            # [BM,M*H]
        pos = jnp.dot(q_exp_bf, wpe_bf, preferred_element_type=f32)      # [BM,COLS]

        # ---- banded softmax (out-of-band / cross-batch -> -1e30 -> exp==0) --
        logits = (s + pos + bias) * inv_sqrt_d
        logits = logits - jnp.max(logits, axis=-1, keepdims=True)
        p = jnp.exp(logits)
        p_bf = p.astype(bf16)

        # attn @ V : lands directly in merged-head [BM, H]; per-head softmax
        # denominators via segment-sum matmul, broadcast onto the head columns.
        ctx   = jnp.dot(p_bf, vbd_bf,      preferred_element_type=f32)   # [BM, H]
        denom = jnp.dot(p_bf, head_mask_bf, preferred_element_type=f32)  # [BM, H]
        attn_merged = ctx * pl.reciprocal(denom, approx=True)

        attn_out = jnp.dot(attn_merged.astype(bf16), wo_ref[l],
                           preferred_element_type=f32)                   # proj_out

        # ---- residual + LayerNorm, FFN, residual + LayerNorm (f32) ----------
        ln_l = ln_ref[l]                                                 # [4, H]
        x = _add_layernorm(x, attn_out, ln_l[0:1, :], ln_l[1:2, :])
        h1 = jnp.maximum(jnp.dot(x.astype(bf16), ffw1_ref[l],
                                 preferred_element_type=f32) + ffb1_ref[l], 0.0)
        ff = jnp.dot(h1.astype(bf16), ffw2_ref[l],
                     preferred_element_type=f32) + ffb2_ref[l]
        x = _add_layernorm(x, ff, ln_l[2:3, :], ln_l[3:4, :])

    # ---- output head + log_softmax (padded-lane mask stays in the f32 bias) -
    z = jnp.dot(x.astype(bf16), outw_ref[...],
                preferred_element_type=f32) + outb_ref[...]
    m = jnp.max(z, axis=-1, keepdims=True)
    lse = m + jnp.log(jnp.sum(jnp.exp(z - m), axis=-1, keepdims=True))
    logp_ref[...] = z - lse


def fused_forward_call(h_flat, cache_flat, cache_valid_len, p):
    BM, H = h_flat.shape
    NL = cache_flat.shape[0]
    vmem = pl.BlockSpec(memory_space=pltpu.MemorySpace.VMEM)
    smem = pl.BlockSpec(memory_space=pltpu.MemorySpace.SMEM)
    cost = pl.CostEstimate(flops=4_000_000, transcendentals=8_192,
                           bytes_accessed=200_000)
    return pl.pallas_call(
        _fused_forward_kernel,
        out_shape=(jax.ShapeDtypeStruct((BM, VOCAB_PAD), jnp.float32),
                   jax.ShapeDtypeStruct((NL, BM, H), jnp.float32)),
        in_specs=[smem] + [vmem] * 18,
        out_specs=(vmem, vmem),
        input_output_aliases={2: 1},        # cache updated in place
        cost_estimate=cost,
    )(cache_valid_len, h_flat, cache_flat,
      p['wq'], p['wk'], p['wv'], p['wo'], p['wpe'],
      p['ffw1'], p['ffb1'], p['ffw2'], p['ffb2'], p['ln'],
      p['head_mask'], p['qexp_mask'], p['band_bias'], p['cpos'],
      p['out_w'], p['out_b'])


# ----------------------------- model glue ------------------------------------
def transformer_forward(h, h_cache_flat, cache_valid_len, params):
    """Matches Transformer.forward (non-adaptive-IO path).  The per-layer cache
    is kept pre-flattened as one [NL, B*span, H] array across steps."""
    B, M, H = h.shape
    logp_pad, cache_next = fused_forward_call(h.reshape(B * M, H),
                                              h_cache_flat, cache_valid_len,
                                              params)
    out = logp_pad[:, :VOCAB].reshape(B, M, VOCAB)
    return out, cache_next, None


# ----------------------------- static layout tables --------------------------
def _static_attention_tables(key_pe_np):
    """Init-time (numpy) tables for the lane-dense column layout
    column = head*(B*L) + h_all_row, h_all = [cache(all batches); current]."""
    L, CW, BM = SEQ_ALL, COLS, BATCH * BLOCK

    col = np.arange(CW)
    hh = col // (BATCH * L)                               # head of column
    q = col % (BATCH * L)                                 # h_all row of column
    is_cur = q >= BATCH * ATTN_SPAN
    b_col = np.where(is_cur, (q - BATCH * ATTN_SPAN) // BLOCK, q // ATTN_SPAN)
    c_q = np.where(is_cur, ATTN_SPAN + (q - BATCH * ATTN_SPAN) % BLOCK,
                   q % ATTN_SPAN)                         # per-batch position

    h_idx = np.arange(HIDDEN)
    head_mask = (hh[:, None] == h_idx[None, :] // HEAD_DIM).astype(np.float32)

    r_idx = np.arange(BM)
    b_r, m_r = r_idx // BLOCK, r_idx % BLOCK
    rel = c_q[None, :] - m_r[:, None]
    in_band = (rel >= 0) & (rel < ATTN_SPAN) & (b_col[None, :] == b_r[:, None])
    band_bias = np.where(in_band, 0.0, -1e30).astype(np.float32)

    gamma = np.arange(BLOCK * HIDDEN)
    qexp_mask = ((gamma[None, :] // HIDDEN) == m_r[:, None]).astype(np.float32)

    cpos = c_q.astype(np.float32)[None, :]

    # key_pe and the per-row skew / band placement baked into one matrix:
    # wpe[m*H + h, col] = key_pe[h % D, c_q - m] for in-band, same-head cols.
    m_a = np.arange(BLOCK)[:, None, None]
    h_a = np.arange(HIDDEN)[None, :, None]
    rel_a = c_q[None, None, :] - m_a
    ok = (rel_a >= 0) & (rel_a < ATTN_SPAN) & ((h_a // HEAD_DIM) == hh[None, None, :])
    vals = key_pe_np[h_a % HEAD_DIM, np.clip(rel_a, 0, ATTN_SPAN - 1)]
    wpe = np.where(ok, vals, 0.0).reshape(BLOCK * HIDDEN, CW).astype(np.float32)

    return head_mask, band_bias, qexp_mask, cpos, wpe


# ----------------------------- parameter init --------------------------------
def init_params(key):
    # TODO(synk): in_emb (nn.Embedding / AdaptiveEmbedding) is never used in
    # Transformer.forward (it consumes pre-embedded hidden states), so it is
    # not materialized here.
    keys = jax.random.split(key, 3 + NB_LAYERS)
    key_pe = jax.random.normal(keys[0], (1, HEAD_DIM, ATTN_SPAN), jnp.float32)
    out_w = 0.05 * jax.random.normal(keys[1], (VOCAB, HIDDEN), jnp.float32)
    out_b = 0.05 * jax.random.normal(keys[2], (VOCAB,), jnp.float32)

    head_mask, band_bias, qexp_mask, cpos, wpe = _static_attention_tables(
        np.asarray(key_pe[0], np.float32))

    out_w_pad = jnp.zeros((HIDDEN, VOCAB_PAD),
                          jnp.float32).at[:, :VOCAB].set(out_w.T)
    # padded-lane mask lives in the f32 bias (added after f32 accumulation)
    out_b_pad = jnp.full((1, VOCAB_PAD), -1e30,
                         jnp.float32).at[0, :VOCAB].set(out_b)

    wq, wk, wv, wo, w1, b1, w2, b2, ln = [], [], [], [], [], [], [], [], []
    for l in range(NB_LAYERS):
        lk = jax.random.split(keys[3 + l], 8)
        wq_l = 0.05 * jax.random.normal(lk[0], (HIDDEN, HIDDEN), jnp.float32)
        wk_l = 0.05 * jax.random.normal(lk[1], (HIDDEN, HIDDEN), jnp.float32)
        wv_l = 0.05 * jax.random.normal(lk[2], (HIDDEN, HIDDEN), jnp.float32)
        wo_l = 0.05 * jax.random.normal(lk[3], (HIDDEN, HIDDEN), jnp.float32)
        w1_l = 0.05 * jax.random.normal(lk[4], (D_INNER, HIDDEN), jnp.float32)
        b1_l = 0.05 * jax.random.normal(lk[5], (D_INNER,), jnp.float32)
        w2_l = 0.05 * jax.random.normal(lk[6], (HIDDEN, D_INNER), jnp.float32)
        b2_l = 0.05 * jax.random.normal(lk[7], (HIDDEN,), jnp.float32)
        # weights pre-transposed ([in, out]) at init time
        wq.append(wq_l.T); wk.append(wk_l.T); wv.append(wv_l.T); wo.append(wo_l.T)
        w1.append(w1_l.T); b1.append(b1_l.reshape(1, D_INNER))
        w2.append(w2_l.T); b2.append(b2_l.reshape(1, HIDDEN))
        ln.append(jnp.stack([jnp.ones((HIDDEN,), jnp.float32),
                             jnp.zeros((HIDDEN,), jnp.float32),
                             jnp.ones((HIDDEN,), jnp.float32),
                             jnp.zeros((HIDDEN,), jnp.float32)], axis=0))

    bf = jnp.bfloat16
    return {
        'wq': jnp.stack(wq).astype(bf), 'wk': jnp.stack(wk).astype(bf),
        'wv': jnp.stack(wv).astype(bf), 'wo': jnp.stack(wo).astype(bf),
        'wpe': jnp.asarray(wpe, bf),                       # [M*H, COLS]
        'ffw1': jnp.stack(w1).astype(bf), 'ffb1': jnp.stack(b1),
        'ffw2': jnp.stack(w2).astype(bf), 'ffb2': jnp.stack(b2),
        'ln': jnp.stack(ln),
        'head_mask': jnp.asarray(head_mask),               # [COLS, H]
        'qexp_mask': jnp.asarray(qexp_mask),               # [B*M, M*H]
        'band_bias': jnp.asarray(band_bias),               # [B*M, COLS]
        'cpos': jnp.asarray(cpos),                         # [1, COLS]
        'out_w': out_w_pad.astype(bf),                     # [H, VOCAB_PAD]
        'out_b': out_b_pad,                                # [1, VOCAB_PAD]
    }


# ----------------------------- main -------------------------------------------
if __name__ == "__main__":
    key = jax.random.PRNGKey(0)
    pkey, hkey = jax.random.split(key)
    params = init_params(pkey)

    # hidden-state input block [B, M, H], zero initial cache, 0 valid cache rows
    h = jax.random.normal(hkey, (BATCH, BLOCK, HIDDEN), jnp.float32)
    cache0 = jnp.zeros((NB_LAYERS, BATCH * ATTN_SPAN, HIDDEN), jnp.float32)
    valid0 = jnp.zeros((1,), jnp.int32)

    fwd = jax.jit(transformer_forward)
    out, cache_next, dummy_loss = fwd(h, cache0, valid0, params)
    jax.block_until_ready(out)
    jax.block_until_ready(cache_next)

    assert out.shape == (BATCH, BLOCK, VOCAB)
    assert cache_next.shape == (NB_LAYERS, BATCH * ATTN_SPAN, HIDDEN)
    assert dummy_loss is None
    # log_softmax rows must normalize (padded vocab lanes must not leak in)
    row_sums = jnp.exp(out).sum(axis=-1)
    assert bool(jnp.all(jnp.abs(row_sums - 1.0) < 1e-3))
    # layer-0 next cache must equal the block input (cache_size == block size)
    assert bool(jnp.allclose(
        cache_next[0].reshape(BATCH, ATTN_SPAN, HIDDEN), h, atol=1e-6))
    print("KERNEL_OK")
</pallas_src>

<mosaic_0001>
module attributes {stable_mosaic.version = 11 : i64} {
  func.func @_fused_forward_kernel(%arg0: memref<1xi32, #tpu.memory_space<smem>>, %arg1: memref<16x32xf32, #tpu.memory_space<vmem>>, %arg2: memref<2x16x32xf32, #tpu.memory_space<vmem>>, %arg3: memref<2x32x32xbf16, #tpu.memory_space<vmem>>, %arg4: memref<2x32x32xbf16, #tpu.memory_space<vmem>>, %arg5: memref<2x32x32xbf16, #tpu.memory_space<vmem>>, %arg6: memref<2x32x32xbf16, #tpu.memory_space<vmem>>, %arg7: memref<256x128xbf16, #tpu.memory_space<vmem>>, %arg8: memref<2x32x64xbf16, #tpu.memory_space<vmem>>, %arg9: memref<2x1x64xf32, #tpu.memory_space<vmem>>, %arg10: memref<2x64x32xbf16, #tpu.memory_space<vmem>>, %arg11: memref<2x1x32xf32, #tpu.memory_space<vmem>>, %arg12: memref<2x4x32xf32, #tpu.memory_space<vmem>>, %arg13: memref<128x32xf32, #tpu.memory_space<vmem>>, %arg14: memref<16x256xf32, #tpu.memory_space<vmem>>, %arg15: memref<16x128xf32, #tpu.memory_space<vmem>>, %arg16: memref<1x128xf32, #tpu.memory_space<vmem>>, %arg17: memref<32x128xbf16, #tpu.memory_space<vmem>>, %arg18: memref<1x128xf32, #tpu.memory_space<vmem>>, %arg19: memref<16x128xf32, #tpu.memory_space<vmem>>, %arg20: memref<2x16x32xf32, #tpu.memory_space<vmem>>) attributes {dimension_semantics = [], scalar_prefetch = 0 : i64, scratch_operands = 0 : i64, tpu.core_type = #tpu.core_type<tc>} {
    %c0 = arith.constant 0 : index
    %c0_0 = arith.constant 0 : index
    %0 = vector.load %arg13[%c0, %c0_0] : memref<128x32xf32, #tpu.memory_space<vmem>>, vector<128x32xf32>
    %1 = arith.truncf %0 : vector<128x32xf32> to vector<128x32xbf16>
    %c0_1 = arith.constant 0 : index
    %c0_2 = arith.constant 0 : index
    %2 = vector.load %arg14[%c0_1, %c0_2] : memref<16x256xf32, #tpu.memory_space<vmem>>, vector<16x256xf32>
    %c0_3 = arith.constant 0 : index
    %c0_4 = arith.constant 0 : index
    %3 = vector.load %arg7[%c0_3, %c0_4] : memref<256x128xbf16, #tpu.memory_space<vmem>>, vector<256x128xbf16>
    %c0_5 = arith.constant 0 : index
    %4 = memref.load %arg0[%c0_5] : memref<1xi32, #tpu.memory_space<smem>>
    %5 = arith.sitofp %4 : i32 to f32
    %c0_6 = arith.constant 0 : index
    %c0_7 = arith.constant 0 : index
    %6 = vector.load %arg16[%c0_6, %c0_7] : memref<1x128xf32, #tpu.memory_space<vmem>>, vector<1x128xf32>
    %cst = arith.constant 8.000000e+00 : f32
    %7 = arith.subf %cst, %5 : f32
    %8 = vector.broadcast %7 : f32 to vector<1x128xf32>
    %9 = arith.cmpf olt, %6, %8 : vector<1x128xf32>
    %cst_8 = arith.constant -1.000000e+06 : f32
    %cst_9 = arith.constant 0.000000e+00 : f32
    %10 = vector.broadcast %cst_8 : f32 to vector<1x128xf32>
    %11 = vector.broadcast %cst_9 : f32 to vector<1x128xf32>
    %12 = arith.select %9, %10, %11 : vector<1x128xi1>, vector<1x128xf32>
    %c0_10 = arith.constant 0 : index
    %c0_11 = arith.constant 0 : index
    %13 = vector.load %arg15[%c0_10, %c0_11] : memref<16x128xf32, #tpu.memory_space<vmem>>, vector<16x128xf32>
    %14 = vector.broadcast %12 : vector<1x128xf32> to vector<16x128xf32>
    %15 = arith.addf %13, %14 : vector<16x128xf32>
    %c0_12 = arith.constant 0 : index
    %c0_13 = arith.constant 0 : index
    %16 = vector.load %arg1[%c0_12, %c0_13] : memref<16x32xf32, #tpu.memory_space<vmem>>, vector<16x32xf32>
    %c0_14 = arith.constant 0 : index
    %c0_15 = arith.constant 0 : index
    %c0_16 = arith.constant 0 : index
    %17 = vector.load %arg20[%c0_14, %c0_15, %c0_16] : memref<2x16x32xf32, #tpu.memory_space<vmem>>, vector<1x16x32xf32>
    %18 = vector.shape_cast %17 : vector<1x16x32xf32> to vector<16x32xf32>
    %19 = vector.shape_cast %16 : vector<16x32xf32> to vector<1x16x32xf32>
    tpu.vector_store %arg20[%c0_14, %c0_15, %c0_16], %19 {strides = array<i32>} : memref<2x16x32xf32, #tpu.memory_space<vmem>>, vector<1x16x32xf32>,
    %20 = arith.truncf %16 : vector<16x32xf32> to vector<16x32xbf16>
    %c0_17 = arith.constant 0 : index
    %c0_18 = arith.constant 0 : index
    %c0_19 = arith.constant 0 : index
    %21 = vector.load %arg2[%c0_17, %c0_18, %c0_19] : memref<2x16x32xf32, #tpu.memory_space<vmem>>, vector<1x16x32xf32>
    %22 = vector.shape_cast %21 : vector<1x16x32xf32> to vector<16x32xf32>
    %23 = arith.truncf %22 : vector<16x32xf32> to vector<16x32xbf16>
    %24 = tpu.concatenate %23, %20 in 0 : vector<16x32xbf16>, vector<16x32xbf16> -> vector<32x32xbf16>
    %c0_20 = arith.constant 0 : index
    %c0_21 = arith.constant 0 : index
    %c0_22 = arith.constant 0 : index
    %25 = vector.load %arg4[%c0_20, %c0_21, %c0_22] : memref<2x32x32xbf16, #tpu.memory_space<vmem>>, vector<1x32x32xbf16>
    %26 = vector.shape_cast %25 : vector<1x32x32xbf16> to vector<32x32xbf16>
    %cst_23 = arith.constant dense<0.000000e+00> : vector<32x32xf32>
    %27 = tpu.matmul %24, %26, %cst_23 {dimension_numbers = #tpu.dot_dimension_numbers<[1], [0], [0], [1], [0, 0, 1, 1], [], []>} : vector<32x32xbf16>, vector<32x32xbf16>, vector<32x32xf32> -> vector<32x32xf32>
    %c0_24 = arith.constant 0 : index
    %c0_25 = arith.constant 0 : index
    %c0_26 = arith.constant 0 : index
    %28 = vector.load %arg5[%c0_24, %c0_25, %c0_26] : memref<2x32x32xbf16, #tpu.memory_space<vmem>>, vector<1x32x32xbf16>
    %29 = vector.shape_cast %28 : vector<1x32x32xbf16> to vector<32x32xbf16>
    %cst_27 = arith.constant dense<0.000000e+00> : vector<32x32xf32>
    %30 = tpu.matmul %24, %29, %cst_27 {dimension_numbers = #tpu.dot_dimension_numbers<[1], [0], [0], [1], [0, 0, 1, 1], [], []>} : vector<32x32xbf16>, vector<32x32xbf16>, vector<32x32xf32> -> vector<32x32xf32>
    %c0_28 = arith.constant 0 : index
    %c0_29 = arith.constant 0 : index
    %c0_30 = arith.constant 0 : index
    %31 = vector.load %arg3[%c0_28, %c0_29, %c0_30] : memref<2x32x32xbf16, #tpu.memory_space<vmem>>, vector<1x32x32xbf16>
    %32 = vector.shape_cast %31 : vector<1x32x32xbf16> to vector<32x32xbf16>
    %cst_31 = arith.constant dense<0.000000e+00> : vector<16x32xf32>
    %33 = tpu.matmul %20, %32, %cst_31 {dimension_numbers = #tpu.dot_dimension_numbers<[1], [0], [0], [1], [0, 0, 1, 1], [], []>} : vector<16x32xbf16>, vector<32x32xbf16>, vector<16x32xf32> -> vector<16x32xf32>
    %34 = tpu.concatenate %27, %27, %27, %27 in 0 : vector<32x32xf32>, vector<32x32xf32>, vector<32x32xf32>, vector<32x32xf32> -> vector<128x32xf32>
    %35 = arith.mulf %34, %0 : vector<128x32xf32>
    %36 = arith.truncf %35 : vector<128x32xf32> to vector<128x32xbf16>
    %37 = tpu.concatenate %30, %30, %30, %30 in 0 : vector<32x32xf32>, vector<32x32xf32>, vector<32x32xf32>, vector<32x32xf32> -> vector<128x32xf32>
    %38 = arith.mulf %37, %0 : vector<128x32xf32>
    %39 = arith.truncf %38 : vector<128x32xf32> to vector<128x32xbf16>
    %40 = arith.truncf %33 : vector<16x32xf32> to vector<16x32xbf16>
    %cst_32 = arith.constant dense<0.000000e+00> : vector<16x128xf32>
    %41 = tpu.matmul %40, %36, %cst_32 {dimension_numbers = #tpu.dot_dimension_numbers<[1], [1], [0], [0], [0, 0, 1, 0], [], []>} : vector<16x32xbf16>, vector<128x32xbf16>, vector<16x128xf32> -> vector<16x128xf32>
    %42 = tpu.concatenate %33, %33, %33, %33, %33, %33, %33, %33 in 1 : vector<16x32xf32>, vector<16x32xf32>, vector<16x32xf32>, vector<16x32xf32>, vector<16x32xf32>, vector<16x32xf32>, vector<16x32xf32>, vector<16x32xf32> -> vector<16x256xf32>
    %43 = arith.mulf %42, %2 : vector<16x256xf32>
    %44 = arith.truncf %43 : vector<16x256xf32> to vector<16x256xbf16>
    %cst_33 = arith.constant dense<0.000000e+00> : vector<16x128xf32>
    %45 = tpu.matmul %44, %3, %cst_33 {dimension_numbers = #tpu.dot_dimension_numbers<[1], [0], [0], [1], [0, 0, 1, 1], [], []>} : vector<16x256xbf16>, vector<256x128xbf16>, vector<16x128xf32> -> vector<16x128xf32>
    %46 = arith.addf %41, %45 : vector<16x128xf32>
    %47 = arith.addf %46, %15 : vector<16x128xf32>
    %cst_34 = arith.constant 0.353553385 : f32
    %48 = vector.broadcast %cst_34 : f32 to vector<16x128xf32>
    %49 = arith.mulf %47, %48 : vector<16x128xf32>
    %cst_35 = arith.constant dense<0xFF800000> : vector<16xf32>
    %50 = vector.multi_reduction <maximumf>, %49, %cst_35 [1] : vector<16x128xf32> to vector<16xf32>
    %51 = vector.shape_cast %50 : vector<16xf32> to vector<16x1xf32>
    %52 = vector.broadcast %51 : vector<16x1xf32> to vector<16x128xf32>
    %53 = arith.subf %49, %52 : vector<16x128xf32>
    %54 = math.exp %53 : vector<16x128xf32>
    %55 = arith.truncf %54 : vector<16x128xf32> to vector<16x128xbf16>
    %cst_36 = arith.constant dense<0.000000e+00> : vector<16x32xf32>
    %56 = tpu.matmul %55, %39, %cst_36 {dimension_numbers = #tpu.dot_dimension_numbers<[1], [0], [0], [1], [0, 0, 1, 1], [], []>} : vector<16x128xbf16>, vector<128x32xbf16>, vector<16x32xf32> -> vector<16x32xf32>
    %cst_37 = arith.constant dense<0.000000e+00> : vector<16x32xf32>
    %57 = tpu.matmul %55, %1, %cst_37 {dimension_numbers = #tpu.dot_dimension_numbers<[1], [0], [0], [1], [0, 0, 1, 1], [], []>} : vector<16x128xbf16>, vector<128x32xbf16>, vector<16x32xf32> -> vector<16x32xf32>
    %58 = tpu.reciprocal %57 {approx = true} : vector<16x32xf32> -> vector<16x32xf32>
    %59 = arith.mulf %56, %58 : vector<16x32xf32>
    %60 = arith.truncf %59 : vector<16x32xf32> to vector<16x32xbf16>
    %c0_38 = arith.constant 0 : index
    %c0_39 = arith.constant 0 : index
    %c0_40 = arith.constant 0 : index
    %61 = vector.load %arg6[%c0_38, %c0_39, %c0_40] : memref<2x32x32xbf16, #tpu.memory_space<vmem>>, vector<1x32x32xbf16>
    %62 = vector.shape_cast %61 : vector<1x32x32xbf16> to vector<32x32xbf16>
    %cst_41 = arith.constant dense<0.000000e+00> : vector<16x32xf32>
    %63 = tpu.matmul %60, %62, %cst_41 {dimension_numbers = #tpu.dot_dimension_numbers<[1], [0], [0], [1], [0, 0, 1, 1], [], []>} : vector<16x32xbf16>, vector<32x32xbf16>, vector<16x32xf32> -> vector<16x32xf32>
    %c0_42 = arith.constant 0 : index
    %c0_43 = arith.constant 0 : index
    %c0_44 = arith.constant 0 : index
    %64 = vector.load %arg12[%c0_42, %c0_43, %c0_44] : memref<2x4x32xf32, #tpu.memory_space<vmem>>, vector<1x4x32xf32>
    %65 = vector.shape_cast %64 : vector<1x4x32xf32> to vector<4x32xf32>
    %66 = vector.extract_strided_slice %65 {offsets = [0, 0], sizes = [1, 32], strides = [1, 1]} : vector<4x32xf32> to vector<1x32xf32>
    %67 = vector.extract_strided_slice %65 {offsets = [1, 0], sizes = [1, 32], strides = [1, 1]} : vector<4x32xf32> to vector<1x32xf32>
    %68 = arith.addf %16, %63 : vector<16x32xf32>
    %cst_45 = arith.constant dense<0.000000e+00> : vector<16xf32>
    %69 = vector.multi_reduction <add>, %68, %cst_45 [1] : vector<16x32xf32> to vector<16xf32>
    %70 = vector.shape_cast %69 : vector<16xf32> to vector<16x1xf32>
    %cst_46 = arith.constant 3.200000e+01 : f32
    %71 = vector.broadcast %cst_46 : f32 to vector<16x1xf32>
    %72 = arith.divf %70, %71 : vector<16x1xf32>
    %73 = vector.broadcast %72 : vector<16x1xf32> to vector<16x32xf32>
    %74 = arith.subf %68, %73 : vector<16x32xf32>
    %75 = arith.mulf %74, %74 : vector<16x32xf32>
    %cst_47 = arith.constant dense<0.000000e+00> : vector<16xf32>
    %76 = vector.multi_reduction <add>, %75, %cst_47 [1] : vector<16x32xf32> to vector<16xf32>
    %77 = vector.shape_cast %76 : vector<16xf32> to vector<16x1xf32>
    %cst_48 = arith.constant 3.200000e+01 : f32
    %78 = vector.broadcast %cst_48 : f32 to vector<16x1xf32>
    %79 = arith.divf %77, %78 : vector<16x1xf32>
    %80 = vector.broadcast %72 : vector<16x1xf32> to vector<16x32xf32>
    %81 = arith.subf %68, %80 : vector<16x32xf32>
    %cst_49 = arith.constant 9.99999974E-6 : f32
    %82 = vector.broadcast %cst_49 : f32 to vector<16x1xf32>
    %83 = arith.addf %79, %82 : vector<16x1xf32>
    %84 = math.rsqrt %83 : vector<16x1xf32>
    %85 = vector.broadcast %84 : vector<16x1xf32> to vector<16x32xf32>
    %86 = arith.mulf %81, %85 : vector<16x32xf32>
    %87 = vector.broadcast %66 : vector<1x32xf32> to vector<16x32xf32>
    %88 = arith.mulf %86, %87 : vector<16x32xf32>
    %89 = vector.broadcast %67 : vector<1x32xf32> to vector<16x32xf32>
    %90 = arith.addf %88, %89 : vector<16x32xf32>
    %91 = arith.truncf %90 : vector<16x32xf32> to vector<16x32xbf16>
    %c0_50 = arith.constant 0 : index
    %c0_51 = arith.constant 0 : index
    %c0_52 = arith.constant 0 : index
    %92 = vector.load %arg8[%c0_50, %c0_51, %c0_52] : memref<2x32x64xbf16, #tpu.memory_space<vmem>>, vector<1x32x64xbf16>
    %93 = vector.shape_cast %92 : vector<1x32x64xbf16> to vector<32x64xbf16>
    %cst_53 = arith.constant dense<0.000000e+00> : vector<16x64xf32>
    %94 = tpu.matmul %91, %93, %cst_53 {dimension_numbers = #tpu.dot_dimension_numbers<[1], [0], [0], [1], [0, 0, 1, 1], [], []>} : vector<16x32xbf16>, vector<32x64xbf16>, vector<16x64xf32> -> vector<16x64xf32>
    %c0_54 = arith.constant 0 : index
    %c0_55 = arith.constant 0 : index
    %c0_56 = arith.constant 0 : index
    %95 = vector.load %arg9[%c0_54, %c0_55, %c0_56] : memref<2x1x64xf32, #tpu.memory_space<vmem>>, vector<1x1x64xf32>
    %96 = vector.shape_cast %95 : vector<1x1x64xf32> to vector<1x64xf32>
    %97 = vector.broadcast %96 : vector<1x64xf32> to vector<16x64xf32>
    %98 = arith.addf %94, %97 : vector<16x64xf32>
    %cst_57 = arith.constant 0.000000e+00 : f32
    %99 = vector.broadcast %cst_57 : f32 to vector<16x64xf32>
    %100 = arith.maximumf %98, %99 : vector<16x64xf32>
    %101 = arith.truncf %100 : vector<16x64xf32> to vector<16x64xbf16>
    %c0_58 = arith.constant 0 : index
    %c0_59 = arith.constant 0 : index
    %c0_60 = arith.constant 0 : index
    %102 = vector.load %arg10[%c0_58, %c0_59, %c0_60] : memref<2x64x32xbf16, #tpu.memory_space<vmem>>, vector<1x64x32xbf16>
    %103 = vector.shape_cast %102 : vector<1x64x32xbf16> to vector<64x32xbf16>
    %cst_61 = arith.constant dense<0.000000e+00> : vector<16x32xf32>
    %104 = tpu.matmul %101, %103, %cst_61 {dimension_numbers = #tpu.dot_dimension_numbers<[1], [0], [0], [1], [0, 0, 1, 1], [], []>} : vector<16x64xbf16>, vector<64x32xbf16>, vector<16x32xf32> -> vector<16x32xf32>
    %c0_62 = arith.constant 0 : index
    %c0_63 = arith.constant 0 : index
    %c0_64 = arith.constant 0 : index
    %105 = vector.load %arg11[%c0_62, %c0_63, %c0_64] : memref<2x1x32xf32, #tpu.memory_space<vmem>>, vector<1x1x32xf32>
    %106 = vector.shape_cast %105 : vector<1x1x32xf32> to vector<1x32xf32>
    %107 = vector.broadcast %106 : vector<1x32xf32> to vector<16x32xf32>
    %108 = arith.addf %104, %107 : vector<16x32xf32>
    %109 = vector.extract_strided_slice %65 {offsets = [2, 0], sizes = [1, 32], strides = [1, 1]} : vector<4x32xf32> to vector<1x32xf32>
    %110 = vector.extract_strided_slice %65 {offsets = [3, 0], sizes = [1, 32], strides = [1, 1]} : vector<4x32xf32> to vector<1x32xf32>
    %111 = arith.addf %90, %108 : vector<16x32xf32>
    %cst_65 = arith.constant dense<0.000000e+00> : vector<16xf32>
    %112 = vector.multi_reduction <add>, %111, %cst_65 [1] : vector<16x32xf32> to vector<16xf32>
    %113 = vector.shape_cast %112 : vector<16xf32> to vector<16x1xf32>
    %cst_66 = arith.constant 3.200000e+01 : f32
    %114 = vector.broadcast %cst_66 : f32 to vector<16x1xf32>
    %115 = arith.divf %113, %114 : vector<16x1xf32>
    %116 = vector.broadcast %115 : vector<16x1xf32> to vector<16x32xf32>
    %117 = arith.subf %111, %116 : vector<16x32xf32>
    %118 = arith.mulf %117, %117 : vector<16x32xf32>
    %cst_67 = arith.constant dense<0.000000e+00> : vector<16xf32>
    %119 = vector.multi_reduction <add>, %118, %cst_67 [1] : vector<16x32xf32> to vector<16xf32>
    %120 = vector.shape_cast %119 : vector<16xf32> to vector<16x1xf32>
    %cst_68 = arith.constant 3.200000e+01 : f32
    %121 = vector.broadcast %cst_68 : f32 to vector<16x1xf32>
    %122 = arith.divf %120, %121 : vector<16x1xf32>
    %123 = vector.broadcast %115 : vector<16x1xf32> to vector<16x32xf32>
    %124 = arith.subf %111, %123 : vector<16x32xf32>
    %cst_69 = arith.constant 9.99999974E-6 : f32
    %125 = vector.broadcast %cst_69 : f32 to vector<16x1xf32>
    %126 = arith.addf %122, %125 : vector<16x1xf32>
    %127 = math.rsqrt %126 : vector<16x1xf32>
    %128 = vector.broadcast %127 : vector<16x1xf32> to vector<16x32xf32>
    %129 = arith.mulf %124, %128 : vector<16x32xf32>
    %130 = vector.broadcast %109 : vector<1x32xf32> to vector<16x32xf32>
    %131 = arith.mulf %129, %130 : vector<16x32xf32>
    %132 = vector.broadcast %110 : vector<1x32xf32> to vector<16x32xf32>
    %133 = arith.addf %131, %132 : vector<16x32xf32>
    %c1 = arith.constant 1 : index
    %c0_70 = arith.constant 0 : index
    %c0_71 = arith.constant 0 : index
    %134 = vector.load %arg20[%c1, %c0_70, %c0_71] : memref<2x16x32xf32, #tpu.memory_space<vmem>>, vector<1x16x32xf32>
    %135 = vector.shape_cast %134 : vector<1x16x32xf32> to vector<16x32xf32>
    %136 = vector.shape_cast %133 : vector<16x32xf32> to vector<1x16x32xf32>
    tpu.vector_store %arg20[%c1, %c0_70, %c0_71], %136 {strides = array<i32>} : memref<2x16x32xf32, #tpu.memory_space<vmem>>, vector<1x16x32xf32>,
    %137 = arith.truncf %133 : vector<16x32xf32> to vector<16x32xbf16>
    %c1_72 = arith.constant 1 : index
    %c0_73 = arith.constant 0 : index
    %c0_74 = arith.constant 0 : index
    %138 = vector.load %arg2[%c1_72, %c0_73, %c0_74] : memref<2x16x32xf32, #tpu.memory_space<vmem>>, vector<1x16x32xf32>
    %139 = vector.shape_cast %138 : vector<1x16x32xf32> to vector<16x32xf32>
    %140 = arith.truncf %139 : vector<16x32xf32> to vector<16x32xbf16>
    %141 = tpu.concatenate %140, %137 in 0 : vector<16x32xbf16>, vector<16x32xbf16> -> vector<32x32xbf16>
    %c1_75 = arith.constant 1 : index
    %c0_76 = arith.constant 0 : index
    %c0_77 = arith.constant 0 : index
    %142 = vector.load %arg4[%c1_75, %c0_76, %c0_77] : memref<2x32x32xbf16, #tpu.memory_space<vmem>>, vector<1x32x32xbf16>
    %143 = vector.shape_cast %142 : vector<1x32x32xbf16> to vector<32x32xbf16>
    %cst_78 = arith.constant dense<0.000000e+00> : vector<32x32xf32>
    %144 = tpu.matmul %141, %143, %cst_78 {dimension_numbers = #tpu.dot_dimension_numbers<[1], [0], [0], [1], [0, 0, 1, 1], [], []>} : vector<32x32xbf16>, vector<32x32xbf16>, vector<32x32xf32> -> vector<32x32xf32>
    %c1_79 = arith.constant 1 : index
    %c0_80 = arith.constant 0 : index
    %c0_81 = arith.constant 0 : index
    %145 = vector.load %arg5[%c1_79, %c0_80, %c0_81] : memref<2x32x32xbf16, #tpu.memory_space<vmem>>, vector<1x32x32xbf16>
    %146 = vector.shape_cast %145 : vector<1x32x32xbf16> to vector<32x32xbf16>
    %cst_82 = arith.constant dense<0.000000e+00> : vector<32x32xf32>
    %147 = tpu.matmul %141, %146, %cst_82 {dimension_numbers = #tpu.dot_dimension_numbers<[1], [0], [0], [1], [0, 0, 1, 1], [], []>} : vector<32x32xbf16>, vector<32x32xbf16>, vector<32x32xf32> -> vector<32x32xf32>
    %c1_83 = arith.constant 1 : index
    %c0_84 = arith.constant 0 : index
    %c0_85 = arith.constant 0 : index
    %148 = vector.load %arg3[%c1_83, %c0_84, %c0_85] : memref<2x32x32xbf16, #tpu.memory_space<vmem>>, vector<1x32x32xbf16>
    %149 = vector.shape_cast %148 : vector<1x32x32xbf16> to vector<32x32xbf16>
    %cst_86 = arith.constant dense<0.000000e+00> : vector<16x32xf32>
    %150 = tpu.matmul %137, %149, %cst_86 {dimension_numbers = #tpu.dot_dimension_numbers<[1], [0], [0], [1], [0, 0, 1, 1], [], []>} : vector<16x32xbf16>, vector<32x32xbf16>, vector<16x32xf32> -> vector<16x32xf32>
    %151 = tpu.concatenate %144, %144, %144, %144 in 0 : vector<32x32xf32>, vector<32x32xf32>, vector<32x32xf32>, vector<32x32xf32> -> vector<128x32xf32>
    %152 = arith.mulf %151, %0 : vector<128x32xf32>
    %153 = arith.truncf %152 : vector<128x32xf32> to vector<128x32xbf16>
    %154 = tpu.concatenate %147, %147, %147, %147 in 0 : vector<32x32xf32>, vector<32x32xf32>, vector<32x32xf32>, vector<32x32xf32> -> vector<128x32xf32>
    %155 = arith.mulf %154, %0 : vector<128x32xf32>
    %156 = arith.truncf %155 : vector<128x32xf32> to vector<128x32xbf16>
    %157 = arith.truncf %150 : vector<16x32xf32> to vector<16x32xbf16>
    %cst_87 = arith.constant dense<0.000000e+00> : vector<16x128xf32>
    %158 = tpu.matmul %157, %153, %cst_87 {dimension_numbers = #tpu.dot_dimension_numbers<[1], [1], [0], [0], [0, 0, 1, 0], [], []>} : vector<16x32xbf16>, vector<128x32xbf16>, vector<16x128xf32> -> vector<16x128xf32>
    %159 = tpu.concatenate %150, %150, %150, %150, %150, %150, %150, %150 in 1 : vector<16x32xf32>, vector<16x32xf32>, vector<16x32xf32>, vector<16x32xf32>, vector<16x32xf32>, vector<16x32xf32>, vector<16x32xf32>, vector<16x32xf32> -> vector<16x256xf32>
    %160 = arith.mulf %159, %2 : vector<16x256xf32>
    %161 = arith.truncf %160 : vector<16x256xf32> to vector<16x256xbf16>
    %cst_88 = arith.constant dense<0.000000e+00> : vector<16x128xf32>
    %162 = tpu.matmul %161, %3, %cst_88 {dimension_numbers = #tpu.dot_dimension_numbers<[1], [0], [0], [1], [0, 0, 1, 1], [], []>} : vector<16x256xbf16>, vector<256x128xbf16>, vector<16x128xf32> -> vector<16x128xf32>
    %163 = arith.addf %158, %162 : vector<16x128xf32>
    %164 = arith.addf %163, %15 : vector<16x128xf32>
    %cst_89 = arith.constant 0.353553385 : f32
    %165 = vector.broadcast %cst_89 : f32 to vector<16x128xf32>
    %166 = arith.mulf %164, %165 : vector<16x128xf32>
    %cst_90 = arith.constant dense<0xFF800000> : vector<16xf32>
    %167 = vector.multi_reduction <maximumf>, %166, %cst_90 [1] : vector<16x128xf32> to vector<16xf32>
    %168 = vector.shape_cast %167 : vector<16xf32> to vector<16x1xf32>
    %169 = vector.broadcast %168 : vector<16x1xf32> to vector<16x128xf32>
    %170 = arith.subf %166, %169 : vector<16x128xf32>
    %171 = math.exp %170 : vector<16x128xf32>
    %172 = arith.truncf %171 : vector<16x128xf32> to vector<16x128xbf16>
    %cst_91 = arith.constant dense<0.000000e+00> : vector<16x32xf32>
    %173 = tpu.matmul %172, %156, %cst_91 {dimension_numbers = #tpu.dot_dimension_numbers<[1], [0], [0], [1], [0, 0, 1, 1], [], []>} : vector<16x128xbf16>, vector<128x32xbf16>, vector<16x32xf32> -> vector<16x32xf32>
    %cst_92 = arith.constant dense<0.000000e+00> : vector<16x32xf32>
    %174 = tpu.matmul %172, %1, %cst_92 {dimension_numbers = #tpu.dot_dimension_numbers<[1], [0], [0], [1], [0, 0, 1, 1], [], []>} : vector<16x128xbf16>, vector<128x32xbf16>, vector<16x32xf32> -> vector<16x32xf32>
    %175 = tpu.reciprocal %174 {approx = true} : vector<16x32xf32> -> vector<16x32xf32>
    %176 = arith.mulf %173, %175 : vector<16x32xf32>
    %177 = arith.truncf %176 : vector<16x32xf32> to vector<16x32xbf16>
    %c1_93 = arith.constant 1 : index
    %c0_94 = arith.constant 0 : index
    %c0_95 = arith.constant 0 : index
    %178 = vector.load %arg6[%c1_93, %c0_94, %c0_95] : memref<2x32x32xbf16, #tpu.memory_space<vmem>>, vector<1x32x32xbf16>
    %179 = vector.shape_cast %178 : vector<1x32x32xbf16> to vector<32x32xbf16>
    %cst_96 = arith.constant dense<0.000000e+00> : vector<16x32xf32>
    %180 = tpu.matmul %177, %179, %cst_96 {dimension_numbers = #tpu.dot_dimension_numbers<[1], [0], [0], [1], [0, 0, 1, 1], [], []>} : vector<16x32xbf16>, vector<32x32xbf16>, vector<16x32xf32> -> vector<16x32xf32>
    %c1_97 = arith.constant 1 : index
    %c0_98 = arith.constant 0 : index
    %c0_99 = arith.constant 0 : index
    %181 = vector.load %arg12[%c1_97, %c0_98, %c0_99] : memref<2x4x32xf32, #tpu.memory_space<vmem>>, vector<1x4x32xf32>
    %182 = vector.shape_cast %181 : vector<1x4x32xf32> to vector<4x32xf32>
    %183 = vector.extract_strided_slice %182 {offsets = [0, 0], sizes = [1, 32], strides = [1, 1]} : vector<4x32xf32> to vector<1x32xf32>
    %184 = vector.extract_strided_slice %182 {offsets = [1, 0], sizes = [1, 32], strides = [1, 1]} : vector<4x32xf32> to vector<1x32xf32>
    %185 = arith.addf %133, %180 : vector<16x32xf32>
    %cst_100 = arith.constant dense<0.000000e+00> : vector<16xf32>
    %186 = vector.multi_reduction <add>, %185, %cst_100 [1] : vector<16x32xf32> to vector<16xf32>
    %187 = vector.shape_cast %186 : vector<16xf32> to vector<16x1xf32>
    %cst_101 = arith.constant 3.200000e+01 : f32
    %188 = vector.broadcast %cst_101 : f32 to vector<16x1xf32>
    %189 = arith.divf %187, %188 : vector<16x1xf32>
    %190 = vector.broadcast %189 : vector<16x1xf32> to vector<16x32xf32>
    %191 = arith.subf %185, %190 : vector<16x32xf32>
    %192 = arith.mulf %191, %191 : vector<16x32xf32>
    %cst_102 = arith.constant dense<0.000000e+00> : vector<16xf32>
    %193 = vector.multi_reduction <add>, %192, %cst_102 [1] : vector<16x32xf32> to vector<16xf32>
    %194 = vector.shape_cast %193 : vector<16xf32> to vector<16x1xf32>
    %cst_103 = arith.constant 3.200000e+01 : f32
    %195 = vector.broadcast %cst_103 : f32 to vector<16x1xf32>
    %196 = arith.divf %194, %195 : vector<16x1xf32>
    %197 = vector.broadcast %189 : vector<16x1xf32> to vector<16x32xf32>
    %198 = arith.subf %185, %197 : vector<16x32xf32>
    %cst_104 = arith.constant 9.99999974E-6 : f32
    %199 = vector.broadcast %cst_104 : f32 to vector<16x1xf32>
    %200 = arith.addf %196, %199 : vector<16x1xf32>
    %201 = math.rsqrt %200 : vector<16x1xf32>
    %202 = vector.broadcast %201 : vector<16x1xf32> to vector<16x32xf32>
    %203 = arith.mulf %198, %202 : vector<16x32xf32>
    %204 = vector.broadcast %183 : vector<1x32xf32> to vector<16x32xf32>
    %205 = arith.mulf %203, %204 : vector<16x32xf32>
    %206 = vector.broadcast %184 : vector<1x32xf32> to vector<16x32xf32>
    %207 = arith.addf %205, %206 : vector<16x32xf32>
    %208 = arith.truncf %207 : vector<16x32xf32> to vector<16x32xbf16>
    %c1_105 = arith.constant 1 : index
    %c0_106 = arith.constant 0 : index
    %c0_107 = arith.constant 0 : index
    %209 = vector.load %arg8[%c1_105, %c0_106, %c0_107] : memref<2x32x64xbf16, #tpu.memory_space<vmem>>, vector<1x32x64xbf16>
    %210 = vector.shape_cast %209 : vector<1x32x64xbf16> to vector<32x64xbf16>
    %cst_108 = arith.constant dense<0.000000e+00> : vector<16x64xf32>
    %211 = tpu.matmul %208, %210, %cst_108 {dimension_numbers = #tpu.dot_dimension_numbers<[1], [0], [0], [1], [0, 0, 1, 1], [], []>} : vector<16x32xbf16>, vector<32x64xbf16>, vector<16x64xf32> -> vector<16x64xf32>
    %c1_109 = arith.constant 1 : index
    %c0_110 = arith.constant 0 : index
    %c0_111 = arith.constant 0 : index
    %212 = vector.load %arg9[%c1_109, %c0_110, %c0_111] : memref<2x1x64xf32, #tpu.memory_space<vmem>>, vector<1x1x64xf32>
    %213 = vector.shape_cast %212 : vector<1x1x64xf32> to vector<1x64xf32>
    %214 = vector.broadcast %213 : vector<1x64xf32> to vector<16x64xf32>
    %215 = arith.addf %211, %214 : vector<16x64xf32>
    %cst_112 = arith.constant 0.000000e+00 : f32
    %216 = vector.broadcast %cst_112 : f32 to vector<16x64xf32>
    %217 = arith.maximumf %215, %216 : vector<16x64xf32>
    %218 = arith.truncf %217 : vector<16x64xf32> to vector<16x64xbf16>
    %c1_113 = arith.constant 1 : index
    %c0_114 = arith.constant 0 : index
    %c0_115 = arith.constant 0 : index
    %219 = vector.load %arg10[%c1_113, %c0_114, %c0_115] : memref<2x64x32xbf16, #tpu.memory_space<vmem>>, vector<1x64x32xbf16>
    %220 = vector.shape_cast %219 : vector<1x64x32xbf16> to vector<64x32xbf16>
    %cst_116 = arith.constant dense<0.000000e+00> : vector<16x32xf32>
    %221 = tpu.matmul %218, %220, %cst_116 {dimension_numbers = #tpu.dot_dimension_numbers<[1], [0], [0], [1], [0, 0, 1, 1], [], []>} : vector<16x64xbf16>, vector<64x32xbf16>, vector<16x32xf32> -> vector<16x32xf32>
    %c1_117 = arith.constant 1 : index
    %c0_118 = arith.constant 0 : index
    %c0_119 = arith.constant 0 : index
    %222 = vector.load %arg11[%c1_117, %c0_118, %c0_119] : memref<2x1x32xf32, #tpu.memory_space<vmem>>, vector<1x1x32xf32>
    %223 = vector.shape_cast %222 : vector<1x1x32xf32> to vector<1x32xf32>
    %224 = vector.broadcast %223 : vector<1x32xf32> to vector<16x32xf32>
    %225 = arith.addf %221, %224 : vector<16x32xf32>
    %226 = vector.extract_strided_slice %182 {offsets = [2, 0], sizes = [1, 32], strides = [1, 1]} : vector<4x32xf32> to vector<1x32xf32>
    %227 = vector.extract_strided_slice %182 {offsets = [3, 0], sizes = [1, 32], strides = [1, 1]} : vector<4x32xf32> to vector<1x32xf32>
    %228 = arith.addf %207, %225 : vector<16x32xf32>
    %cst_120 = arith.constant dense<0.000000e+00> : vector<16xf32>
    %229 = vector.multi_reduction <add>, %228, %cst_120 [1] : vector<16x32xf32> to vector<16xf32>
    %230 = vector.shape_cast %229 : vector<16xf32> to vector<16x1xf32>
    %cst_121 = arith.constant 3.200000e+01 : f32
    %231 = vector.broadcast %cst_121 : f32 to vector<16x1xf32>
    %232 = arith.divf %230, %231 : vector<16x1xf32>
    %233 = vector.broadcast %232 : vector<16x1xf32> to vector<16x32xf32>
    %234 = arith.subf %228, %233 : vector<16x32xf32>
    %235 = arith.mulf %234, %234 : vector<16x32xf32>
    %cst_122 = arith.constant dense<0.000000e+00> : vector<16xf32>
    %236 = vector.multi_reduction <add>, %235, %cst_122 [1] : vector<16x32xf32> to vector<16xf32>
    %237 = vector.shape_cast %236 : vector<16xf32> to vector<16x1xf32>
    %cst_123 = arith.constant 3.200000e+01 : f32
    %238 = vector.broadcast %cst_123 : f32 to vector<16x1xf32>
    %239 = arith.divf %237, %238 : vector<16x1xf32>
    %240 = vector.broadcast %232 : vector<16x1xf32> to vector<16x32xf32>
    %241 = arith.subf %228, %240 : vector<16x32xf32>
    %cst_124 = arith.constant 9.99999974E-6 : f32
    %242 = vector.broadcast %cst_124 : f32 to vector<16x1xf32>
    %243 = arith.addf %239, %242 : vector<16x1xf32>
    %244 = math.rsqrt %243 : vector<16x1xf32>
    %245 = vector.broadcast %244 : vector<16x1xf32> to vector<16x32xf32>
    %246 = arith.mulf %241, %245 : vector<16x32xf32>
    %247 = vector.broadcast %226 : vector<1x32xf32> to vector<16x32xf32>
    %248 = arith.mulf %246, %247 : vector<16x32xf32>
    %249 = vector.broadcast %227 : vector<1x32xf32> to vector<16x32xf32>
    %250 = arith.addf %248, %249 : vector<16x32xf32>
    %251 = arith.truncf %250 : vector<16x32xf32> to vector<16x32xbf16>
    %c0_125 = arith.constant 0 : index
    %c0_126 = arith.constant 0 : index
    %252 = vector.load %arg17[%c0_125, %c0_126] : memref<32x128xbf16, #tpu.memory_space<vmem>>, vector<32x128xbf16>
    %cst_127 = arith.constant dense<0.000000e+00> : vector<16x128xf32>
    %253 = tpu.matmul %251, %252, %cst_127 {dimension_numbers = #tpu.dot_dimension_numbers<[1], [0], [0], [1], [0, 0, 1, 1], [], []>} : vector<16x32xbf16>, vector<32x128xbf16>, vector<16x128xf32> -> vector<16x128xf32>
    %c0_128 = arith.constant 0 : index
    %c0_129 = arith.constant 0 : index
    %254 = vector.load %arg18[%c0_128, %c0_129] : memref<1x128xf32, #tpu.memory_space<vmem>>, vector<1x128xf32>
    %255 = vector.broadcast %254 : vector<1x128xf32> to vector<16x128xf32>
    %256 = arith.addf %253, %255 : vector<16x128xf32>
    %cst_130 = arith.constant dense<0xFF800000> : vector<16xf32>
    %257 = vector.multi_reduction <maximumf>, %256, %cst_130 [1] : vector<16x128xf32> to vector<16xf32>
    %258 = vector.shape_cast %257 : vector<16xf32> to vector<16x1xf32>
    %259 = vector.broadcast %258 : vector<16x1xf32> to vector<16x128xf32>
    %260 = arith.subf %256, %259 : vector<16x128xf32>
    %261 = math.exp %260 : vector<16x128xf32>
    %cst_131 = arith.constant dense<0.000000e+00> : vector<16xf32>
    %262 = vector.multi_reduction <add>, %261, %cst_131 [1] : vector<16x128xf32> to vector<16xf32>
    %263 = vector.shape_cast %262 : vector<16xf32> to vector<16x1xf32>
    %264 = math.log %263 : vector<16x1xf32>
    %265 = arith.addf %258, %264 : vector<16x1xf32>
    %266 = vector.broadcast %265 : vector<16x1xf32> to vector<16x128xf32>
    %267 = arith.subf %256, %266 : vector<16x128xf32>
    %c0_132 = arith.constant 0 : index
    %c0_133 = arith.constant 0 : index
    %268 = vector.load %arg19[%c0_132, %c0_133] : memref<16x128xf32, #tpu.memory_space<vmem>>, vector<16x128xf32>
    tpu.vector_store %arg19[%c0_132, %c0_133], %267 {strides = array<i32>} : memref<16x128xf32, #tpu.memory_space<vmem>>, vector<16x128xf32>,
    return
  }
}

</mosaic_0001>

<llo_original>
// kernel: transformer_forward.1
$region0: #{transformer_forward.1}
  #allocation0 [shape = 'u32[]', space=smem, size = 0x4, offset = 0x4, fixed_abs, tag = 'smem constant byte address 0x4 - core index']
  #allocation1 [shape = 'u32[72,128]{1,0:T(1,128)}', space=vmem, size = 0x9000, scoped, tag = 'internal scratch']
  #allocation2 [shape = 's32[1]{0:T(128)S(6)}', space=smem, size = 0x200, scoped, tag = 'scoped memory for transformer_forward.1']
  %s0 = inlined_call_operand.<no memory space> [shape: s32[1], index: 0, kind: input, shape index: {}]
  %s1 = inlined_call_operand.vmem [shape: f32[16,32], index: 1, kind: input, shape index: {}]
  %s2 = inlined_call_operand.vmem [shape: f32[2,16,32], index: 2, kind: input, shape index: {}, may-alias: {2,20}]
  %s3 = inlined_call_operand.vmem [shape: bf16[2,32,32], index: 3, kind: input, shape index: {}]
  %s4 = inlined_call_operand.vmem [shape: bf16[2,32,32], index: 4, kind: input, shape index: {}]
  %s5 = inlined_call_operand.vmem [shape: bf16[2,32,32], index: 5, kind: input, shape index: {}]
  %s6 = inlined_call_operand.vmem [shape: bf16[2,32,32], index: 6, kind: input, shape index: {}]
  %s7 = inlined_call_operand.vmem [shape: bf16[256,128], index: 7, kind: input, shape index: {}]
  %s8 = inlined_call_operand.vmem [shape: bf16[2,32,64], index: 8, kind: input, shape index: {}]
  %s9 = inlined_call_operand.vmem [shape: f32[2,1,64], index: 9, kind: input, shape index: {}]
  %s10 = inlined_call_operand.vmem [shape: bf16[2,64,32], index: 10, kind: input, shape index: {}]
  %s11 = inlined_call_operand.hbm [shape: f32[2,1,32], index: 11, kind: input, shape index: {}]
  %s12 = inlined_call_operand.hbm [shape: f32[2,4,32], index: 12, kind: input, shape index: {}]
  %s13 = inlined_call_operand.vmem [shape: f32[128,32], index: 13, kind: input, shape index: {}]
  %s14 = inlined_call_operand.hbm [shape: f32[16,256], index: 14, kind: input, shape index: {}]
  %s15 = inlined_call_operand.hbm [shape: f32[16,128], index: 15, kind: input, shape index: {}]
  %s16 = inlined_call_operand.hbm [shape: f32[1,128], index: 16, kind: input, shape index: {}]
  %s17 = inlined_call_operand.hbm [shape: bf16[32,128], index: 17, kind: input, shape index: {}]
  %s18 = inlined_call_operand.hbm [shape: f32[1,128], index: 18, kind: input, shape index: {}]
  %s19 = inlined_call_operand.vmem [shape: f32[16,128], index: 19, kind: output, shape index: {0}]
  %s20 = inlined_call_operand.vmem [shape: f32[2,16,32], index: 20, kind: output, shape index: {1}, may-alias: {2,20}]
  %21 = xla_tuple %s19, %s20
  %s22 = sld [smem:[#allocation0]]
  $region122: #{transformer_forward.1} parent=0
    _
  %s24 = ssub.s32 1, %s22
  %s25 = scalar_select 0, %s24, %s22
  %26 = sst [smem:[#allocation2]] %s0
  $region1: #{transformer_forward.1} parent=0
    #allocation3 [shape = 'u8[1024]{0}', space=vmem, size = 0x400, scoped, tag = 'input window, operand 11, single buffered']
    #allocation4 [shape = 's32[1]{0}', space=sflag, size = 0x4, scoped, tag = 'scoped memory for transformer_forward.1']
    #allocation5 [shape = 'u8[4096]{0}', space=vmem, size = 0x1000, scoped, tag = 'input window, operand 12, single buffered']
    #allocation6 [shape = 's32[1]{0}', space=sflag, size = 0x4, scoped, tag = 'scoped memory for transformer_forward.1']
    #allocation7 [shape = 'u8[16384]{0}', space=vmem, size = 0x4000, scoped, tag = 'input window, operand 14, single buffered']
    #allocation8 [shape = 'u8[8192]{0}', space=vmem, size = 0x2000, scoped, tag = 'input window, operand 15, single buffered']
    #allocation9 [shape = 's32[1]{0}', space=sflag, size = 0x4, scoped, tag = 'scoped memory for transformer_forward.1']
    #allocation10 [shape = 'u8[512]{0}', space=vmem, size = 0x400, scoped, tag = 'input window, operand 16, single buffered']
    #allocation11 [shape = 'u8[8192]{0}', space=vmem, size = 0x2000, scoped, tag = 'input window, operand 17, single buffered']
    #allocation12 [shape = 's32[1]{0}', space=sflag, size = 0x4, scoped, tag = 'scoped memory for transformer_forward.1']
    #allocation13 [shape = 'u8[512]{0}', space=vmem, size = 0x400, scoped, tag = 'input window, operand 18, single buffered']
    %27 = vsyncpa [#allocation4], 0
    %28 = vsyncpa [#allocation6], 0
    %29 = vsyncpa [#allocation9], 0
    %30 = vsyncpa [#allocation12], 0
    // Predicated region
    $region2: #{transformer_forward.1} parent=1 // pred_check
      _
    $region3: #{transformer_forward.1} parent=1 // pred_check_branch
      %32 = sbr.rel (0) target = $region5
    $region4: #{transformer_forward.1} parent=1 // pred_region
      _
    $region5: #{transformer_forward.1} parent=1 // pred_fallthru
      _
    // Predicated region
    $region6: #{transformer_forward.1} parent=1 // pred_check
      _
    $region7: #{transformer_forward.1} parent=1 // pred_check_branch
      %34 = sbr.rel (0) target = $region9
    $region8: #{transformer_forward.1} parent=1 // pred_region
      _
    $region9: #{transformer_forward.1} parent=1 // pred_fallthru
      _
    // Predicated region
    $region10: #{transformer_forward.1} parent=1 // pred_check
      _
    $region11: #{transformer_forward.1} parent=1 // pred_check_branch
      %36 = sbr.rel (0) target = $region13
    $region12: #{transformer_forward.1} parent=1 // pred_region
      _
    $region13: #{transformer_forward.1} parent=1 // pred_fallthru
      _
    // Predicated region
    $region14: #{transformer_forward.1} parent=1 // pred_check
      _
    $region15: #{transformer_forward.1} parent=1 // pred_check_branch
      %38 = sbr.rel (0) target = $region17
    $region16: #{transformer_forward.1} parent=1 // pred_region
      _
    $region17: #{transformer_forward.1} parent=1 // pred_fallthru
      _
    // Predicated region
    $region18: #{transformer_forward.1} parent=1 // pred_check
      _
    $region19: #{transformer_forward.1} parent=1 // pred_check_branch
      %40 = sbr.rel (0) target = $region21
    $region20: #{transformer_forward.1} parent=1 // pred_region
      _
    $region21: #{transformer_forward.1} parent=1 // pred_fallthru
      _
    // Predicated region
    $region22: #{transformer_forward.1} parent=1 // pred_check
      _
    $region23: #{transformer_forward.1} parent=1 // pred_check_branch
      %42 = sbr.rel (0) target = $region25
    $region24: #{transformer_forward.1} parent=1 // pred_region
      _
    $region25: #{transformer_forward.1} parent=1 // pred_fallthru
      _
    // Predicated region
    $region26: #{transformer_forward.1} parent=1 // pred_check
      _
    $region27: #{transformer_forward.1} parent=1 // pred_check_branch
      %44 = sbr.rel (0) target = $region29
    $region28: #{transformer_forward.1} parent=1 // pred_region
      _
    $region29: #{transformer_forward.1} parent=1 // pred_fallthru
      _
    // Predicated region
    $region30: #{transformer_forward.1} parent=1 // pred_check
      _
    $region31: #{transformer_forward.1} parent=1 // pred_check_branch
      %46 = sbr.rel (0) target = $region33
    $region32: #{transformer_forward.1} parent=1 // pred_region
      _
    $region33: #{transformer_forward.1} parent=1 // pred_fallthru
      _
    // Predicated region
    $region34: #{transformer_forward.1} parent=1 // pred_check
      _
    $region35: #{transformer_forward.1} parent=1 // pred_check_branch
      %48 = sbr.rel (0) target = $region37
    $region36: #{transformer_forward.1} parent=1 // pred_region
      _
    $region37: #{transformer_forward.1} parent=1 // pred_fallthru
      _
    // Predicated region
    $region38: #{transformer_forward.1} parent=1 // pred_check
      _
    $region39: #{transformer_forward.1} parent=1 // pred_check_branch
      %50 = sbr.rel (0) target = $region41
    $region40: #{transformer_forward.1} parent=1 // pred_region
      _
    $region41: #{transformer_forward.1} parent=1 // pred_fallthru
      _
    // Predicated region
    $region42: #{transformer_forward.1} parent=1 // pred_check
      _
    $region43: #{transformer_forward.1} parent=1 // pred_check_branch
      %52 = sbr.rel (0) target = $region45
    $region44: #{transformer_forward.1} parent=1 // pred_region
      _
    $region45: #{transformer_forward.1} parent=1 // pred_fallthru
      _
    // Predicated region
    $region46: #{transformer_forward.1} parent=1 // pred_check
      _
    $region47: #{transformer_forward.1} parent=1 // pred_check_branch
      %54 = sbr.rel (0) target = $region49
    $region48: #{transformer_forward.1} parent=1 // pred_region
      %56 = vsyncadd [#allocation4], 0
      %s57 = sshll.u32 %s11, 4
      %s58 = int_to_ptr.hbm [resolvable:$true] %s57
      %s59 = sshll.u32 [#allocation3], 4
      %s60 = int_to_ptr.vmem [resolvable:$true] %s59
      %65 = dma.hbm_to_vmem [thread:$0]  %s58, 32, %s60, [#allocation4], 16, 16, 1
    $region49: #{transformer_forward.1} parent=1 // pred_fallthru
      _
    // Predicated region
    $region50: #{transformer_forward.1} parent=1 // pred_check
      _
    $region51: #{transformer_forward.1} parent=1 // pred_check_branch
      %67 = sbr.rel (0) target = $region53
    $region52: #{transformer_forward.1} parent=1 // pred_region
      %69 = vsyncadd [#allocation6], 0
      %s70 = sshll.u32 %s12, 4
      %s71 = int_to_ptr.hbm [resolvable:$true] %s70
      %s72 = sshll.u32 [#allocation5], 4
      %s73 = int_to_ptr.vmem [resolvable:$true] %s72
      %78 = dma.hbm_to_vmem [thread:$0]  %s71, 128, %s73, [#allocation6], 64, 64, 4
    $region53: #{transformer_forward.1} parent=1 // pred_fallthru
      _
    // Predicated region
    $region54: #{transformer_forward.1} parent=1 // pred_check
      _
    $region55: #{transformer_forward.1} parent=1 // pred_check_branch
      %80 = sbr.rel (0) target = $region57
    $region56: #{transformer_forward.1} parent=1 // pred_region
      _
    $region57: #{transformer_forward.1} parent=1 // pred_fallthru
      _
    // Predicated region
    $region58: #{transformer_forward.1} parent=1 // pred_check
      _
    $region59: #{transformer_forward.1} parent=1 // pred_check_branch
      %82 = sbr.rel (0) target = $region61
    $region60: #{transformer_forward.1} parent=1 // pred_region
      %84 = vsyncadd [#allocation6], 0
      %s85 = sshll.u32 %s14, 4
      %s86 = int_to_ptr.hbm [resolvable:$true] %s85
      %s87 = sshll.u32 [#allocation7], 4
      %s88 = int_to_ptr.vmem [resolvable:$true] %s87
      %93 = dma.hbm_to_vmem [thread:$0]  %s86, 512, %s88, [#allocation6], 256, 256, 16
    $region61: #{transformer_forward.1} parent=1 // pred_fallthru
      _
    // Predicated region
    $region62: #{transformer_forward.1} parent=1 // pred_check
      _
    $region63: #{transformer_forward.1} parent=1 // pred_check_branch
      %95 = sbr.rel (0) target = $region65
    $region64: #{transformer_forward.1} parent=1 // pred_region
      %97 = vsyncadd [#allocation9], 0
      %s98 = sshll.u32 %s15, 4
      %s99 = int_to_ptr.hbm [resolvable:$true] %s98
      %s100 = sshll.u32 [#allocation8], 4
      %s101 = int_to_ptr.vmem [resolvable:$true] %s100
      %106 = dma.hbm_to_vmem [thread:$0]  %s99, 256, %s101, [#allocation9], 128, 128, 8
    $region65: #{transformer_forward.1} parent=1 // pred_fallthru
      _
    // Predicated region
    $region66: #{transformer_forward.1} parent=1 // pred_check
      _
    $region67: #{transformer_forward.1} parent=1 // pred_check_branch
      %108 = sbr.rel (0) target = $region69
    $region68: #{transformer_forward.1} parent=1 // pred_region
      %110 = vsyncadd [#allocation9], 0
      %s112 = sshll.u32 %s16, 4
      %s113 = int_to_ptr.hbm [resolvable:$true] %s112
      %s114 = sshll.u32 [#allocation10], 4
      %s115 = int_to_ptr.vmem [resolvable:$true] %s114
      %117 = dma.hbm_to_vmem [thread:$0]  %s113, 16, %s115, [#allocation9]
    $region69: #{transformer_forward.1} parent=1 // pred_fallthru
      _
    // Predicated region
    $region70: #{transformer_forward.1} parent=1 // pred_check
      _
    $region71: #{transformer_forward.1} parent=1 // pred_check_branch
      %119 = sbr.rel (0) target = $region73
    $region72: #{transformer_forward.1} parent=1 // pred_region
      %121 = vsyncadd [#allocation12], 0
      %s122 = sshll.u32 %s17, 4
      %s123 = int_to_ptr.hbm [resolvable:$true] %s122
      %s124 = sshll.u32 [#allocation11], 4
      %s125 = int_to_ptr.vmem [resolvable:$true] %s124
      %130 = dma.hbm_to_vmem [thread:$0]  %s123, 256, %s125, [#allocation12], 64, 64, 4
    $region73: #{transformer_forward.1} parent=1 // pred_fallthru
      _
    // Predicated region
    $region74: #{transformer_forward.1} parent=1 // pred_check
      _
    $region75: #{transformer_forward.1} parent=1 // pred_check_branch
      %132 = sbr.rel (0) target = $region77
    $region76: #{transformer_forward.1} parent=1 // pred_region
      %134 = vsyncadd [#allocation12], 0
      %s136 = sshll.u32 %s18, 4
      %s137 = int_to_ptr.hbm [resolvable:$true] %s136
      %s138 = sshll.u32 [#allocation13], 4
      %s139 = int_to_ptr.vmem [resolvable:$true] %s138
      %141 = dma.hbm_to_vmem [thread:$0]  %s137, 16, %s139, [#allocation12]
    $region77: #{transformer_forward.1} parent=1 // pred_fallthru
      _
    // Predicated region
    $region78: #{transformer_forward.1} parent=1 // pred_check
      _
    $region79: #{transformer_forward.1} parent=1 // pred_check_branch
      %143 = sbr.rel (0) target = $region81
    $region80: #{transformer_forward.1} parent=1 // pred_region
      %145 = dma.done [#allocation4], 32
    $region81: #{transformer_forward.1} parent=1 // pred_fallthru
      _
    // Predicated region
    $region82: #{transformer_forward.1} parent=1 // pred_check
      _
    $region83: #{transformer_forward.1} parent=1 // pred_check_branch
      %147 = sbr.rel (0) target = $region85
    $region84: #{transformer_forward.1} parent=1 // pred_region
      %149 = dma.done [#allocation6], 128
    $region85: #{transformer_forward.1} parent=1 // pred_fallthru
      _
    // Predicated region
    $region86: #{transformer_forward.1} parent=1 // pred_check
      _
    $region87: #{transformer_forward.1} parent=1 // pred_check_branch
      %151 = sbr.rel (0) target = $region89
    $region88: #{transformer_forward.1} parent=1 // pred_region
      %153 = dma.done [#allocation6], 512
    $region89: #{transformer_forward.1} parent=1 // pred_fallthru
      _
    // Predicated region
    $region90: #{transformer_forward.1} parent=1 // pred_check
      _
    $region91: #{transformer_forward.1} parent=1 // pred_check_branch
      %155 = sbr.rel (0) target = $region93
    $region92: #{transformer_forward.1} parent=1 // pred_region
      %157 = dma.done [#allocation9], 256
    $region93: #{transformer_forward.1} parent=1 // pred_fallthru
      _
    // Predicated region
    $region94: #{transformer_forward.1} parent=1 // pred_check
      _
    $region95: #{transformer_forward.1} parent=1 // pred_check_branch
      %159 = sbr.rel (0) target = $region97
    $region96: #{transformer_forward.1} parent=1 // pred_region
      %161 = dma.done [#allocation9], 16
    $region97: #{transformer_forward.1} parent=1 // pred_fallthru
      _
    // Predicated region
    $region98: #{transformer_forward.1} parent=1 // pred_check
      _
    $region99: #{transformer_forward.1} parent=1 // pred_check_branch
      %163 = sbr.rel (0) target = $region101
    $region100: #{transformer_forward.1} parent=1 // pred_region
      %165 = dma.done [#allocation12], 256
    $region101: #{transformer_forward.1} parent=1 // pred_fallthru
      _
    // Predicated region
    $region102: #{transformer_forward.1} parent=1 // pred_check
      _
    $region103: #{transformer_forward.1} parent=1 // pred_check_branch
      %167 = sbr.rel (0) target = $region105
    $region104: #{transformer_forward.1} parent=1 // pred_region
      %169 = dma.done [#allocation12], 16
    $region105: #{transformer_forward.1} parent=1 // pred_fallthru
      _
    %v171 = vld [vmem:[%s13] sm:$0xff]
    %v172 = vld [vmem:[%s13 + $0x8] sm:$0xff]
    %v173 = vld [vmem:[%s13 + $0x10] sm:$0xff]
    %v174 = vld [vmem:[%s13 + $0x18] sm:$0xff]
    %v175 = vld [vmem:[%s13 + $0x20] sm:$0xff]
    %v176 = vld [vmem:[%s13 + $0x28] sm:$0xff]
    %v177 = vld [vmem:[%s13 + $0x30] sm:$0xff]
    %v178 = vld [vmem:[%s13 + $0x38] sm:$0xff]
    %v179 = vld [vmem:[%s13 + $0x40] sm:$0xff]
    %v180 = vld [vmem:[%s13 + $0x48] sm:$0xff]
    %v181 = vld [vmem:[%s13 + $0x50] sm:$0xff]
    %v182 = vld [vmem:[%s13 + $0x58] sm:$0xff]
    %v183 = vld [vmem:[%s13 + $0x60] sm:$0xff]
    %v184 = vld [vmem:[%s13 + $0x68] sm:$0xff]
    %v185 = vld [vmem:[%s13 + $0x70] sm:$0xff]
    %v186 = vld [vmem:[%s13 + $0x78] sm:$0xff]
    %v187 = vpack.c.bf16 %v172, %v171
    %v188 = vpack.c.bf16 %v174, %v173
    %v189 = vpack.c.bf16 %v176, %v175
    %v190 = vpack.c.bf16 %v178, %v177
    %v191 = vpack.c.bf16 %v180, %v179
    %v192 = vpack.c.bf16 %v182, %v181
    %v193 = vpack.c.bf16 %v184, %v183
    %v194 = vpack.c.bf16 %v186, %v185
    %v195 = vld [vmem:[#allocation7] sm:$0xff]
    %v196 = vld [vmem:[#allocation7 + $0x8] sm:$0xff]
    %v197 = vld [vmem:[#allocation7 + $0x10] sm:$0xff]
    %v198 = vld [vmem:[#allocation7 + $0x18] sm:$0xff]
    %v199 = vld [vmem:[%s7] sm:$0xf]
    %v200 = vld [vmem:[%s7 + $0x4] sm:$0xf]
    %v201 = vld [vmem:[%s7 + $0x8] sm:$0xf]
    %v202 = vld [vmem:[%s7 + $0xc] sm:$0xf]
    %v203 = vld [vmem:[%s7 + $0x10] sm:$0xf]
    %v204 = vld [vmem:[%s7 + $0x14] sm:$0xf]
    %v205 = vld [vmem:[%s7 + $0x18] sm:$0xf]
    %v206 = vld [vmem:[%s7 + $0x1c] sm:$0xf]
    %v207 = vld [vmem:[%s7 + $0x20] sm:$0xf]
    %v208 = vld [vmem:[%s7 + $0x24] sm:$0xf]
    %v209 = vld [vmem:[%s7 + $0x28] sm:$0xf]
    %v210 = vld [vmem:[%s7 + $0x2c] sm:$0xf]
    %v211 = vld [vmem:[%s7 + $0x30] sm:$0xf]
    %v212 = vld [vmem:[%s7 + $0x34] sm:$0xf]
    %v213 = vld [vmem:[%s7 + $0x38] sm:$0xf]
    %v214 = vld [vmem:[%s7 + $0x3c] sm:$0xf]
    %v215 = vld [vmem:[%s7 + $0x40] sm:$0xf]
    %v216 = vld [vmem:[%s7 + $0x44] sm:$0xf]
    %v217 = vld [vmem:[%s7 + $0x48] sm:$0xf]
    %v218 = vld [vmem:[%s7 + $0x4c] sm:$0xf]
    %v219 = vld [vmem:[%s7 + $0x50] sm:$0xf]
    %v220 = vld [vmem:[%s7 + $0x54] sm:$0xf]
    %v221 = vld [vmem:[%s7 + $0x58] sm:$0xf]
    %v222 = vld [vmem:[%s7 + $0x5c] sm:$0xf]
    %v223 = vld [vmem:[%s7 + $0x60] sm:$0xf]
    %v224 = vld [vmem:[%s7 + $0x64] sm:$0xf]
    %v225 = vld [vmem:[%s7 + $0x68] sm:$0xf]
    %v226 = vld [vmem:[%s7 + $0x6c] sm:$0xf]
    %v227 = vld [vmem:[%s7 + $0x70] sm:$0xf]
    %v228 = vld [vmem:[%s7 + $0x74] sm:$0xf]
    %v229 = vld [vmem:[%s7 + $0x78] sm:$0xf]
    %v230 = vld [vmem:[%s7 + $0x7c] sm:$0xf]
    %s231 = sld [smem:[#allocation2]]
    %s232 = scvt.s32.f32 %s231
    %v233 = vld [vmem:[#allocation10] sm:$0x1]
    %s234 = ssub.f32 8.0, %s232
    %v235 = vstv %s234
    %vm236 = vcmp.lt.f32.partialorder %v233, %v235
    %v237 = vsel %vm236, -1000000.0, 0.0
    %v238 = vld [vmem:[#allocation8] sm:$0xff]
    %v239 = vld [vmem:[#allocation8 + $0x8] sm:$0xff]
    %v241 = vperm.slane %v237, 0
    %v243 = vadd.f32 %v238, %v241
    %v244 = vadd.f32 %v239, %v241
    %v245 = vld [vmem:[%s1] sm:$0xff]
    %v246 = vld [vmem:[%s1 + $0x8] sm:$0xff]
    %vm247 = vcmask 261120
    %248 = vst.msk [vmem:[%s20] sm:$0xff] %vm247, %v245
    %249 = vst.msk [vmem:[%s20 + $0x8] sm:$0xff] %vm247, %v246
    %v250 = vpack.c.bf16 %v245, %v245
    %v251 = vpack.c.bf16 %v246, %v246
    %v252 = vld [vmem:[%s2] sm:$0xff]
    %v253 = vld [vmem:[%s2 + $0x8] sm:$0xff]
    %v254 = vpack.c.bf16 %v252, %v252
    %v255 = vpack.c.bf16 %v253, %v253
    %v258 = vunpack.c.l.b16 %v254
    %v259 = vunpack.c.l.b16 %v255
    %v260 = vpack.c.b16 %v259, %v258
    %v263 = vunpack.c.l.b16 %v250
    %v264 = vunpack.c.l.b16 %v251
    %v265 = vpack.c.b16 %v264, %v263
    %v266 = vld [vmem:[%s4] sm:$0xf]
    %v267 = vld [vmem:[%s4 + $0x4] sm:$0xf]
    %v268 = vld [vmem:[%s4 + $0x8] sm:$0xf]
    %v269 = vld [vmem:[%s4 + $0xc] sm:$0xf]
    %v274 = vunpack.c.l.b16 %v266
    %v275 = vunpack.c.l.b16 %v267
    %v276 = vunpack.c.l.b16 %v268
    %v277 = vunpack.c.l.b16 %v269
    %v278 = vpack.c.b16 %v275, %v274
    %v279 = vpack.c.b16 %v277, %v276
    %v283 = vsel %vm247, %v260, 0
    %v286 = vsel %vm247, %v265, 0
    %288 = vmatpush.bf16.msra.mxu0 0
    %289 = vmatpush.bf16.msra.mxu0 0
    %290 = vmatpush.bf16.msra.mxu0 0
    %291 = vmatpush.bf16.msra.mxu0 0
    %292 = vmatpush.bf16.msra.mxu0 0
    %293 = vmatpush.bf16.msra.mxu0 0
    %294 = vmatpush.bf16.msra.mxu0 %v279
    %295 = vmatpush.bf16.msra.mxu0 %v278
    %296 = vmatmul.bf16.gmra.mxu0 %v283
    %v297 = vpop.f32.mrf.mxu0
    %v298 = vadd.f32 0.0, %v297
    %v299 = vpop.f32.mrf.mxu0
    %v300 = vadd.f32 0.0, %v299
    %301 = vmatmul.bf16.gmra.mxu0 %v286
    %v302 = vpop.f32.mrf.mxu0
    %v303 = vadd.f32 0.0, %v302
    %v304 = vpop.f32.mrf.mxu0
    %v305 = vadd.f32 0.0, %v304
    %306 = vdwg.mxu0
    %v307 = vld [vmem:[%s5] sm:$0xf]
    %v308 = vld [vmem:[%s5 + $0x4] sm:$0xf]
    %v309 = vld [vmem:[%s5 + $0x8] sm:$0xf]
    %v310 = vld [vmem:[%s5 + $0xc] sm:$0xf]
    %v315 = vunpack.c.l.b16 %v307
    %v316 = vunpack.c.l.b16 %v308
    %v317 = vunpack.c.l.b16 %v309
    %v318 = vunpack.c.l.b16 %v310
    %v319 = vpack.c.b16 %v316, %v315
    %v320 = vpack.c.b16 %v318, %v317
    %323 = vmatpush.bf16.msra.mxu0 0
    %324 = vmatpush.bf16.msra.mxu0 0
    %325 = vmatpush.bf16.msra.mxu0 0
    %326 = vmatpush.bf16.msra.mxu0 0
    %327 = vmatpush.bf16.msra.mxu0 0
    %328 = vmatpush.bf16.msra.mxu0 0
    %329 = vmatpush.bf16.msra.mxu0 %v320
    %330 = vmatpush.bf16.msra.mxu0 %v319
    %331 = vmatmul.bf16.gmra.mxu0 %v283
    %v332 = vpop.f32.mrf.mxu0
    %v333 = vadd.f32 0.0, %v332
    %v334 = vpop.f32.mrf.mxu0
    %v335 = vadd.f32 0.0, %v334
    %336 = vmatmul.bf16.gmra.mxu0 %v286
    %v337 = vpop.f32.mrf.mxu0
    %v338 = vadd.f32 0.0, %v337
    %v339 = vpop.f32.mrf.mxu0
    %v340 = vadd.f32 0.0, %v339
    %341 = vdwg.mxu0
    %v342 = vld [vmem:[%s3] sm:$0xf]
    %v343 = vld [vmem:[%s3 + $0x4] sm:$0xf]
    %v344 = vld [vmem:[%s3 + $0x8] sm:$0xf]
    %v345 = vld [vmem:[%s3 + $0xc] sm:$0xf]
    %v350 = vunpack.c.l.b16 %v342
    %v351 = vunpack.c.l.b16 %v343
    %v352 = vunpack.c.l.b16 %v344
    %v353 = vunpack.c.l.b16 %v345
    %v354 = vpack.c.b16 %v351, %v350
    %v355 = vpack.c.b16 %v353, %v352
    %358 = vmatpush.bf16.msra.mxu0 0
    %359 = vmatpush.bf16.msra.mxu0 0
    %360 = vmatpush.bf16.msra.mxu0 0
    %361 = vmatpush.bf16.msra.mxu0 0
    %362 = vmatpush.bf16.msra.mxu0 0
    %363 = vmatpush.bf16.msra.mxu0 0
    %364 = vmatpush.bf16.msra.mxu0 %v355
    %365 = vmatpush.bf16.msra.mxu0 %v354
    %366 = vmatmul.bf16.gmra.mxu0 %v286
    %v367 = vpop.f32.mrf.mxu0
    %v368 = vadd.f32 0.0, %v367
    %v369 = vpop.f32.mrf.mxu0
    %v370 = vadd.f32 0.0, %v369
    %371 = vdwg.mxu0
    %v372 = vmul.f32 %v298, %v171
    %v373 = vmul.f32 %v300, %v172
    %v374 = vmul.f32 %v303, %v173
    %v375 = vmul.f32 %v305, %v174
    %v376 = vmul.f32 %v298, %v175
    %v377 = vmul.f32 %v300, %v176
    %v378 = vmul.f32 %v303, %v177
    %v379 = vmul.f32 %v305, %v178
    %v380 = vmul.f32 %v298, %v179
    %v381 = vmul.f32 %v300, %v180
    %v382 = vmul.f32 %v303, %v181
    %v383 = vmul.f32 %v305, %v182
    %v384 = vmul.f32 %v298, %v183
    %v385 = vmul.f32 %v300, %v184
    %v386 = vmul.f32 %v303, %v185
    %v387 = vmul.f32 %v305, %v186
    %v388 = vpack.c.bf16 %v373, %v372
    %v389 = vpack.c.bf16 %v375, %v374
    %v390 = vpack.c.bf16 %v377, %v376
    %v391 = vpack.c.bf16 %v379, %v378
    %v392 = vpack.c.bf16 %v381, %v380
    %v393 = vpack.c.bf16 %v383, %v382
    %v394 = vpack.c.bf16 %v385, %v384
    %v395 = vpack.c.bf16 %v387, %v386
    %v396 = vmul.f32 %v333, %v171
    %v397 = vmul.f32 %v335, %v172
    %v398 = vmul.f32 %v338, %v173
    %v399 = vmul.f32 %v340, %v174
    %v400 = vmul.f32 %v333, %v175
    %v401 = vmul.f32 %v335, %v176
    %v402 = vmul.f32 %v338, %v177
    %v403 = vmul.f32 %v340, %v178
    %v404 = vmul.f32 %v333, %v179
    %v405 = vmul.f32 %v335, %v180
    %v406 = vmul.f32 %v338, %v181
    %v407 = vmul.f32 %v340, %v182
    %v408 = vmul.f32 %v333, %v183
    %v409 = vmul.f32 %v335, %v184
    %v410 = vmul.f32 %v338, %v185
    %v411 = vmul.f32 %v340, %v186
    %v412 = vpack.c.bf16 %v397, %v396
    %v413 = vpack.c.bf16 %v399, %v398
    %v414 = vpack.c.bf16 %v401, %v400
    %v415 = vpack.c.bf16 %v403, %v402
    %v416 = vpack.c.bf16 %v405, %v404
    %v417 = vpack.c.bf16 %v407, %v406
    %v418 = vpack.c.bf16 %v409, %v408
    %v419 = vpack.c.bf16 %v411, %v410
    %v420 = vpack.c.bf16 %v370, %v368
    %423 = vrot.lane.b32.xlu0 %v368, 32
    %v424 = vpop.permute.xlu0 %423
    %425 = vrot.lane.b32.xlu0 %v370, 32
    %v426 = vpop.permute.xlu0 %425
    %429 = vrot.lane.b32.xlu0 %v368, 64
    %v430 = vpop.permute.xlu0 %429
    %431 = vrot.lane.b32.xlu0 %v370, 64
    %v432 = vpop.permute.xlu0 %431
    %435 = vrot.lane.b32.xlu0 %v368, 96
    %v436 = vpop.permute.xlu0 %435
    %437 = vrot.lane.b32.xlu0 %v370, 96
    %v438 = vpop.permute.xlu0 %437
    %v441 = vsel %vm247, %v368, %v424
    %v442 = vsel %vm247, %v370, %v426
    %vm443 = vcmask 523264
    %v444 = vsel %vm443, %v441, %v430
    %v445 = vsel %vm443, %v442, %v432
    %vm446 = vcmask 785408
    %v447 = vsel %vm446, %v444, %v436
    %v448 = vsel %vm446, %v445, %v438
    %v449 = vmul.f32 %v447, %v195
    %v450 = vmul.f32 %v447, %v196
    %v451 = vmul.f32 %v448, %v197
    %v452 = vmul.f32 %v448, %v198
    %v453 = vpack.c.bf16 %v451, %v449
    %v454 = vpack.c.bf16 %v452, %v450
    %v487 = vunpack.c.l.b16 %v199
    %v488 = vunpack.c.l.b16 %v200
    %v489 = vunpack.c.l.b16 %v201
    %v490 = vunpack.c.l.b16 %v202
    %v491 = vunpack.c.l.b16 %v203
    %v492 = vunpack.c.l.b16 %v204
    %v493 = vunpack.c.l.b16 %v205
    %v494 = vunpack.c.l.b16 %v206
    %v495 = vunpack.c.l.b16 %v207
    %v496 = vunpack.c.l.b16 %v208
    %v497 = vunpack.c.l.b16 %v209
    %v498 = vunpack.c.l.b16 %v210
    %v499 = vunpack.c.l.b16 %v211
    %v500 = vunpack.c.l.b16 %v212
    %v501 = vunpack.c.l.b16 %v213
    %v502 = vunpack.c.l.b16 %v214
    %v503 = vunpack.c.l.b16 %v215
    %v504 = vunpack.c.l.b16 %v216
    %v505 = vunpack.c.l.b16 %v217
    %v506 = vunpack.c.l.b16 %v218
    %v507 = vunpack.c.l.b16 %v219
    %v508 = vunpack.c.l.b16 %v220
    %v509 = vunpack.c.l.b16 %v221
    %v510 = vunpack.c.l.b16 %v222
    %v511 = vunpack.c.l.b16 %v223
    %v512 = vunpack.c.l.b16 %v224
    %v513 = vunpack.c.l.b16 %v225
    %v514 = vunpack.c.l.b16 %v226
    %v515 = vunpack.c.l.b16 %v227
    %v516 = vunpack.c.l.b16 %v228
    %v517 = vunpack.c.l.b16 %v229
    %v518 = vunpack.c.l.b16 %v230
    %v519 = vpack.c.b16 %v488, %v487
    %v520 = vpack.c.b16 %v490, %v489
    %v521 = vpack.c.b16 %v492, %v491
    %v522 = vpack.c.b16 %v494, %v493
    %v523 = vpack.c.b16 %v496, %v495
    %v524 = vpack.c.b16 %v498, %v497
    %v525 = vpack.c.b16 %v500, %v499
    %v526 = vpack.c.b16 %v502, %v501
    %v527 = vpack.c.b16 %v504, %v503
    %v528 = vpack.c.b16 %v506, %v505
    %v529 = vpack.c.b16 %v508, %v507
    %v530 = vpack.c.b16 %v510, %v509
    %v531 = vpack.c.b16 %v512, %v511
    %v532 = vpack.c.b16 %v514, %v513
    %v533 = vpack.c.b16 %v516, %v515
    %v534 = vpack.c.b16 %v518, %v517
    %551 = vmatpush.bf16.msra.mxu0 %v526
    %552 = vmatpush.bf16.msra.mxu0 %v525
    %553 = vmatpush.bf16.msra.mxu0 %v524
    %554 = vmatpush.bf16.msra.mxu0 %v523
    %555 = vmatpush.bf16.msra.mxu0 %v522
    %556 = vmatpush.bf16.msra.mxu0 %v521
    %557 = vmatpush.bf16.msra.mxu0 %v520
    %558 = vmatpush.bf16.msra.mxu0 %v519
    %559 = vmatmul.bf16.gmra.mxu0 %v453
    %v560 = vpop.f32.mrf.mxu0
    %v561 = vadd.f32 0.0, %v560
    %v562 = vpop.f32.mrf.mxu0
    %v563 = vadd.f32 0.0, %v562
    %564 = vdwg.mxu0
    %565 = vmatpush.bf16.msra.mxu0 %v534
    %566 = vmatpush.bf16.msra.mxu0 %v533
    %567 = vmatpush.bf16.msra.mxu0 %v532
    %568 = vmatpush.bf16.msra.mxu0 %v531
    %569 = vmatpush.bf16.msra.mxu0 %v530
    %570 = vmatpush.bf16.msra.mxu0 %v529
    %571 = vmatpush.bf16.msra.mxu0 %v528
    %572 = vmatpush.bf16.msra.mxu0 %v527
    %573 = vmatmul.bf16.gmra.mxu0 %v454
    %v574 = vpop.f32.mrf.mxu0
    %v575 = vadd.f32 %v561, %v574
    %v576 = vpop.f32.mrf.mxu0
    %v577 = vadd.f32 %v563, %v576
    %578 = vdwg.mxu0
    %v580 = vsel %vm247, %v420, 0
    %v583 = vsel %vm247, %v388, 0
    %v586 = vsel %vm247, %v389, 0
    %v589 = vsel %vm247, %v390, 0
    %v592 = vsel %vm247, %v391, 0
    %v595 = vsel %vm247, %v392, 0
    %v598 = vsel %vm247, %v393, 0
    %v601 = vsel %vm247, %v394, 0
    %v604 = vsel %vm247, %v395, 0
    %606 = vmatpush.bf16.xpose.msra.mxu0 %v604
    %607 = vmatpush.bf16.xpose.msra.mxu0 %v601
    %608 = vmatpush.bf16.xpose.msra.mxu0 %v598
    %609 = vmatpush.bf16.xpose.msra.mxu0 %v595
    %610 = vmatpush.bf16.xpose.msra.mxu0 %v592
    %611 = vmatpush.bf16.xpose.msra.mxu0 %v589
    %612 = vmatpush.bf16.xpose.msra.mxu0 %v586
    %613 = vmatpush.bf16.xpose.msra.mxu0 %v583
    %614 = vmatmul.bf16.gmra.mxu0 %v580
    %v615 = vpop.f32.mrf.mxu0
    %v616 = vadd.f32 %v575, %v615
    %v617 = vpop.f32.mrf.mxu0
    %v618 = vadd.f32 %v577, %v617
    %619 = vdwg.mxu0
    %v620 = vadd.f32 %v616, %v243
    %v621 = vadd.f32 %v618, %v244
    %v622 = vmul.f32 %v620, 0.35355338
    %v623 = vmul.f32 %v621, 0.35355338
    %624 = vmax.xlane.f32.xlu0 %v622
    %v625 = vpop.xlane.xlu0 %624
    %626 = vmax.xlane.f32.xlu0 %v623
    %v627 = vpop.xlane.xlu0 %626
    %v628 = vsub.f32 %v622, %v625
    %v629 = vsub.f32 %v623, %v627
    %v630 = vmul.f32 %v628, 1.442695
    %v631 = vpow.pop %v630
    %v632 = vmul.f32 %v629, 1.442695
    %v633 = vpow.pop %v632
    %v634 = vpack.c.bf16 %v633, %v631
    %635 = vmatpush.bf16.msra.mxu0 %v419
    %636 = vmatpush.bf16.msra.mxu0 %v418
    %637 = vmatpush.bf16.msra.mxu0 %v417
    %638 = vmatpush.bf16.msra.mxu0 %v416
    %639 = vmatpush.bf16.msra.mxu0 %v415
    %640 = vmatpush.bf16.msra.mxu0 %v414
    %641 = vmatpush.bf16.msra.mxu0 %v413
    %642 = vmatpush.bf16.msra.mxu0 %v412
    %643 = vmatmul.bf16.gmra.mxu0 %v634
    %v644 = vpop.f32.mrf.mxu0
    %v645 = vadd.f32 0.0, %v644
    %v646 = vpop.f32.mrf.mxu0
    %v647 = vadd.f32 0.0, %v646
    %648 = vdwg.mxu0
    %649 = vmatpush.bf16.msra.mxu0 %v194
    %650 = vmatpush.bf16.msra.mxu0 %v193
    %651 = vmatpush.bf16.msra.mxu0 %v192
    %652 = vmatpush.bf16.msra.mxu0 %v191
    %653 = vmatpush.bf16.msra.mxu0 %v190
    %654 = vmatpush.bf16.msra.mxu0 %v189
    %655 = vmatpush.bf16.msra.mxu0 %v188
    %656 = vmatpush.bf16.msra.mxu0 %v187
    %657 = vmatmul.bf16.gmra.mxu0 %v634
    %v658 = vpop.f32.mrf.mxu0
    %v659 = vadd.f32 0.0, %v658
    %v660 = vpop.f32.mrf.mxu0
    %v661 = vadd.f32 0.0, %v660
    %662 = vdwg.mxu0
    %v663 = vrcp.pop %v659
    %v664 = vrcp.pop %v661
    %v665 = vmul.f32 %v645, %v663
    %v666 = vmul.f32 %v647, %v664
    %v667 = vpack.c.bf16 %v666, %v665
    %v668 = vld [vmem:[%s6] sm:$0xf]
    %v669 = vld [vmem:[%s6 + $0x4] sm:$0xf]
    %v670 = vld [vmem:[%s6 + $0x8] sm:$0xf]
    %v671 = vld [vmem:[%s6 + $0xc] sm:$0xf]
    %v676 = vunpack.c.l.b16 %v668
    %v677 = vunpack.c.l.b16 %v669
    %v678 = vunpack.c.l.b16 %v670
    %v679 = vunpack.c.l.b16 %v671
    %v680 = vpack.c.b16 %v677, %v676
    %v681 = vpack.c.b16 %v679, %v678
    %v685 = vsel %vm247, %v667, 0
    %687 = vmatpush.bf16.msra.mxu0 0
    %688 = vmatpush.bf16.msra.mxu0 0
    %689 = vmatpush.bf16.msra.mxu0 0
    %690 = vmatpush.bf16.msra.mxu0 0
    %691 = vmatpush.bf16.msra.mxu0 0
    %692 = vmatpush.bf16.msra.mxu0 0
    %693 = vmatpush.bf16.msra.mxu0 %v681
    %694 = vmatpush.bf16.msra.mxu0 %v680
    %695 = vmatmul.bf16.gmra.mxu0 %v685
    %v696 = vpop.f32.mrf.mxu0
    %v697 = vadd.f32 0.0, %v696
    %v698 = vpop.f32.mrf.mxu0
    %v699 = vadd.f32 0.0, %v698
    %700 = vdwg.mxu0
    %v701 = vld [vmem:[#allocation5] sm:$0xf]
    %v702 = vadd.f32 %v245, %v697
    %v703 = vadd.f32 %v246, %v699
    %v704 = vsel %vm247, %v702, 0.0
    %705 = vadd.xlane.f32.xlu0 %v704
    %v706 = vpop.xlane.xlu0 %705
    %v707 = vsel %vm247, %v703, 0.0
    %708 = vadd.xlane.f32.xlu0 %v707
    %v709 = vpop.xlane.xlu0 %708
    %v710 = vrcp.pop 32.0
    %v711 = vmul.f32 32.0, %v710
    %v712 = vsub.f32 1.0, %v711
    %v713 = vmul.f32 %v710, %v712
    %v714 = vadd.f32 %v710, %v713
    %vm715 = vweird.f32 %v710
    %v716 = vsel %vm715, %v710, %v714
    %v717 = vmul.f32 %v706, %v716
    %v718 = vmul.f32 %v709, %v716
    %v719 = vsub.f32 %v702, %v717
    %v720 = vsub.f32 %v703, %v718
    %v721 = vmul.f32 %v719, %v719
    %v722 = vmul.f32 %v720, %v720
    %v723 = vsel %vm247, %v721, 0.0
    %724 = vadd.xlane.f32.xlu0 %v723
    %v725 = vpop.xlane.xlu0 %724
    %v726 = vsel %vm247, %v722, 0.0
    %727 = vadd.xlane.f32.xlu0 %v726
    %v728 = vpop.xlane.xlu0 %727
    %v729 = vmul.f32 %v725, %v716
    %v730 = vmul.f32 %v728, %v716
    %v731 = vadd.f32 %v729, 1e-05
    %v732 = vadd.f32 %v730, 1e-05
    %v733 = vrsqrt.pop %v731
    %v734 = vmul.f32 %v733, %v731
    %v735 = vmul.f32 %v734, %v733
    %v736 = vmul.f32 0.5, %v735
    %v737 = vsub.f32 1.5, %v736
    %v738 = vmul.f32 %v733, %v737
    %vm739 = vweird.f32 %v731
    %vm740 = vweird.f32 %v733
    %vm741 = vmor %vm739, %vm740
    %v742 = vsel %vm741, %v733, %v738
    %v743 = vrsqrt.pop %v732
    %v744 = vmul.f32 %v743, %v732
    %v745 = vmul.f32 %v744, %v743
    %v746 = vmul.f32 0.5, %v745
    %v747 = vsub.f32 1.5, %v746
    %v748 = vmul.f32 %v743, %v747
    %vm749 = vweird.f32 %v732
    %vm750 = vweird.f32 %v743
    %vm751 = vmor %vm749, %vm750
    %v752 = vsel %vm751, %v743, %v748
    %v753 = vmul.f32 %v719, %v742
    %v754 = vmul.f32 %v720, %v752
    %v755 = vperm.slane %v701, 0
    %v756 = vmul.f32 %v753, %v755
    %v757 = vmul.f32 %v754, %v755
    %v758 = vperm.slane %v701, 1
    %v759 = vadd.f32 %v756, %v758
    %v760 = vadd.f32 %v757, %v758
    %v761 = vpack.c.bf16 %v760, %v759
    %v762 = vld [vmem:[%s8] sm:$0xf]
    %v763 = vld [vmem:[%s8 + $0x4] sm:$0xf]
    %v764 = vld [vmem:[%s8 + $0x8] sm:$0xf]
    %v765 = vld [vmem:[%s8 + $0xc] sm:$0xf]
    %v766 = vld [vmem:[%s9] sm:$0x1]
    %v768 = vperm.slane %v766, 0
    %v774 = vunpack.c.l.b16 %v762
    %v775 = vunpack.c.l.b16 %v763
    %v776 = vunpack.c.l.b16 %v764
    %v777 = vunpack.c.l.b16 %v765
    %v778 = vpack.c.b16 %v775, %v774
    %v779 = vpack.c.b16 %v777, %v776
    %v783 = vsel %vm247, %v761, 0
    %785 = vmatpush.bf16.msra.mxu0 0
    %786 = vmatpush.bf16.msra.mxu0 0
    %787 = vmatpush.bf16.msra.mxu0 0
    %788 = vmatpush.bf16.msra.mxu0 0
    %789 = vmatpush.bf16.msra.mxu0 0
    %790 = vmatpush.bf16.msra.mxu0 0
    %791 = vmatpush.bf16.msra.mxu0 %v779
    %792 = vmatpush.bf16.msra.mxu0 %v778
    %793 = vmatmul.bf16.gmra.mxu0 %v783
    %v794 = vpop.f32.mrf.mxu0
    %v795 = vadd.f32 %v768, %v794
    %v796 = vpop.f32.mrf.mxu0
    %v797 = vadd.f32 %v768, %v796
    %798 = vdwg.mxu0
    %v799 = vmax.f32 %v795, 0.0
    %v800 = vmax.f32 %v797, 0.0
    %v801 = vpack.c.bf16 %v800, %v799
    %v802 = vld [vmem:[%s10] sm:$0xf]
    %v803 = vld [vmem:[%s10 + $0x4] sm:$0xf]
    %v804 = vld [vmem:[%s10 + $0x8] sm:$0xf]
    %v805 = vld [vmem:[%s10 + $0xc] sm:$0xf]
    %v806 = vld [vmem:[%s10 + $0x10] sm:$0xf]
    %v807 = vld [vmem:[%s10 + $0x14] sm:$0xf]
    %v808 = vld [vmem:[%s10 + $0x18] sm:$0xf]
    %v809 = vld [vmem:[%s10 + $0x1c] sm:$0xf]
    %v810 = vld [vmem:[#allocation3] sm:$0x1]
    %v812 = vperm.slane %v810, 0
    %v822 = vunpack.c.l.b16 %v802
    %v823 = vunpack.c.l.b16 %v803
    %v824 = vunpack.c.l.b16 %v804
    %v825 = vunpack.c.l.b16 %v805
    %v826 = vunpack.c.l.b16 %v806
    %v827 = vunpack.c.l.b16 %v807
    %v828 = vunpack.c.l.b16 %v808
    %v829 = vunpack.c.l.b16 %v809
    %v830 = vpack.c.b16 %v823, %v822
    %v831 = vpack.c.b16 %v825, %v824
    %v832 = vpack.c.b16 %v827, %v826
    %v833 = vpack.c.b16 %v829, %v828
    %v839 = vsel %vm443, %v801, 0
    %841 = vmatpush.bf16.msra.mxu0 0
    %842 = vmatpush.bf16.msra.mxu0 0
    %843 = vmatpush.bf16.msra.mxu0 0
    %844 = vmatpush.bf16.msra.mxu0 0
    %845 = vmatpush.bf16.msra.mxu0 %v833
    %846 = vmatpush.bf16.msra.mxu0 %v832
    %847 = vmatpush.bf16.msra.mxu0 %v831
    %848 = vmatpush.bf16.msra.mxu0 %v830
    %849 = vmatmul.bf16.gmra.mxu0 %v839
    %v850 = vpop.f32.mrf.mxu0
    %v851 = vadd.f32 %v812, %v850
    %v852 = vpop.f32.mrf.mxu0
    %v853 = vadd.f32 %v812, %v852
    %854 = vdwg.mxu0
    %v855 = vadd.f32 %v759, %v851
    %v856 = vadd.f32 %v760, %v853
    %v857 = vsel %vm247, %v855, 0.0
    %858 = vadd.xlane.f32.xlu0 %v857
    %v859 = vpop.xlane.xlu0 %858
    %v860 = vsel %vm247, %v856, 0.0
    %861 = vadd.xlane.f32.xlu0 %v860
    %v862 = vpop.xlane.xlu0 %861
    %v863 = vmul.f32 %v859, %v716
    %v864 = vmul.f32 %v862, %v716
    %v865 = vsub.f32 %v855, %v863
    %v866 = vsub.f32 %v856, %v864
    %v867 = vmul.f32 %v865, %v865
    %v868 = vmul.f32 %v866, %v866
    %v869 = vsel %vm247, %v867, 0.0
    %870 = vadd.xlane.f32.xlu0 %v869
    %v871 = vpop.xlane.xlu0 %870
    %v872 = vsel %vm247, %v868, 0.0
    %873 = vadd.xlane.f32.xlu0 %v872
    %v874 = vpop.xlane.xlu0 %873
    %v875 = vmul.f32 %v871, %v716
    %v876 = vmul.f32 %v874, %v716
    %v877 = vadd.f32 %v875, 1e-05
    %v878 = vadd.f32 %v876, 1e-05
    %v879 = vrsqrt.pop %v877
    %v880 = vmul.f32 %v879, %v877
    %v881 = vmul.f32 %v880, %v879
    %v882 = vmul.f32 0.5, %v881
    %v883 = vsub.f32 1.5, %v882
    %v884 = vmul.f32 %v879, %v883
    %vm885 = vweird.f32 %v877
    %vm886 = vweird.f32 %v879
    %vm887 = vmor %vm885, %vm886
    %v888 = vsel %vm887, %v879, %v884
    %v889 = vrsqrt.pop %v878
    %v890 = vmul.f32 %v889, %v878
    %v891 = vmul.f32 %v890, %v889
    %v892 = vmul.f32 0.5, %v891
    %v893 = vsub.f32 1.5, %v892
    %v894 = vmul.f32 %v889, %v893
    %vm895 = vweird.f32 %v878
    %vm896 = vweird.f32 %v889
    %vm897 = vmor %vm895, %vm896
    %v898 = vsel %vm897, %v889, %v894
    %v899 = vmul.f32 %v865, %v888
    %v900 = vmul.f32 %v866, %v898
    %v901 = vperm.slane %v701, 2
    %v902 = vmul.f32 %v899, %v901
    %v903 = vmul.f32 %v900, %v901
    %v904 = vperm.slane %v701, 3
    %v905 = vadd.f32 %v902, %v904
    %v906 = vadd.f32 %v903, %v904
    %s907 = scalar_lea.vmem %s20, 16
    %908 = vst.msk [vmem:[%s907] sm:$0xff] %vm247, %v905
    %909 = vst.msk [vmem:[%s907 + $0x8] sm:$0xff] %vm247, %v906
    %v910 = vpack.c.bf16 %v905, %v905
    %v911 = vpack.c.bf16 %v906, %v906
    %s912 = scalar_lea.vmem %s2, 16
    %v913 = vld [vmem:[%s912] sm:$0xff]
    %v914 = vld [vmem:[%s912 + $0x8] sm:$0xff]
    %v915 = vpack.c.bf16 %v913, %v913
    %v916 = vpack.c.bf16 %v914, %v914
    %v919 = vunpack.c.l.b16 %v915
    %v920 = vunpack.c.l.b16 %v916
    %v921 = vpack.c.b16 %v920, %v919
    %v924 = vunpack.c.l.b16 %v910
    %v925 = vunpack.c.l.b16 %v911
    %v926 = vpack.c.b16 %v925, %v924
    %s927 = scalar_lea.vmem %s4, 16
    %v928 = vld [vmem:[%s927] sm:$0xf]
    %v929 = vld [vmem:[%s927 + $0x4] sm:$0xf]
    %v930 = vld [vmem:[%s927 + $0x8] sm:$0xf]
    %v931 = vld [vmem:[%s927 + $0xc] sm:$0xf]
    %v936 = vunpack.c.l.b16 %v928
    %v937 = vunpack.c.l.b16 %v929
    %v938 = vunpack.c.l.b16 %v930
    %v939 = vunpack.c.l.b16 %v931
    %v940 = vpack.c.b16 %v937, %v936
    %v941 = vpack.c.b16 %v939, %v938
    %v945 = vsel %vm247, %v921, 0
    %v948 = vsel %vm247, %v926, 0
    %950 = vmatpush.bf16.msra.mxu0 0
    %951 = vmatpush.bf16.msra.mxu0 0
    %952 = vmatpush.bf16.msra.mxu0 0
    %953 = vmatpush.bf16.msra.mxu0 0
    %954 = vmatpush.bf16.msra.mxu0 0
    %955 = vmatpush.bf16.msra.mxu0 0
    %956 = vmatpush.bf16.msra.mxu0 %v941
    %957 = vmatpush.bf16.msra.mxu0 %v940
    %958 = vmatmul.bf16.gmra.mxu0 %v945
    %v959 = vpop.f32.mrf.mxu0
    %v960 = vadd.f32 0.0, %v959
    %v961 = vpop.f32.mrf.mxu0
    %v962 = vadd.f32 0.0, %v961
    %963 = vmatmul.bf16.gmra.mxu0 %v948
    %v964 = vpop.f32.mrf.mxu0
    %v965 = vadd.f32 0.0, %v964
    %v966 = vpop.f32.mrf.mxu0
    %v967 = vadd.f32 0.0, %v966
    %968 = vdwg.mxu0
    %s969 = scalar_lea.vmem %s5, 16
    %v970 = vld [vmem:[%s969] sm:$0xf]
    %v971 = vld [vmem:[%s969 + $0x4] sm:$0xf]
    %v972 = vld [vmem:[%s969 + $0x8] sm:$0xf]
    %v973 = vld [vmem:[%s969 + $0xc] sm:$0xf]
    %v978 = vunpack.c.l.b16 %v970
    %v979 = vunpack.c.l.b16 %v971
    %v980 = vunpack.c.l.b16 %v972
    %v981 = vunpack.c.l.b16 %v973
    %v982 = vpack.c.b16 %v979, %v978
    %v983 = vpack.c.b16 %v981, %v980
    %986 = vmatpush.bf16.msra.mxu0 0
    %987 = vmatpush.bf16.msra.mxu0 0
    %988 = vmatpush.bf16.msra.mxu0 0
    %989 = vmatpush.bf16.msra.mxu0 0
    %990 = vmatpush.bf16.msra.mxu0 0
    %991 = vmatpush.bf16.msra.mxu0 0
    %992 = vmatpush.bf16.msra.mxu0 %v983
    %993 = vmatpush.bf16.msra.mxu0 %v982
    %994 = vmatmul.bf16.gmra.mxu0 %v945
    %v995 = vpop.f32.mrf.mxu0
    %v996 = vadd.f32 0.0, %v995
    %v997 = vpop.f32.mrf.mxu0
    %v998 = vadd.f32 0.0, %v997
    %999 = vmatmul.bf16.gmra.mxu0 %v948
    %v1000 = vpop.f32.mrf.mxu0
    %v1001 = vadd.f32 0.0, %v1000
    %v1002 = vpop.f32.mrf.mxu0
    %v1003 = vadd.f32 0.0, %v1002
    %1004 = vdwg.mxu0
    %s1005 = scalar_lea.vmem %s3, 16
    %v1006 = vld [vmem:[%s1005] sm:$0xf]
    %v1007 = vld [vmem:[%s1005 + $0x4] sm:$0xf]
    %v1008 = vld [vmem:[%s1005 + $0x8] sm:$0xf]
    %v1009 = vld [vmem:[%s1005 + $0xc] sm:$0xf]
    %v1014 = vunpack.c.l.b16 %v1006
    %v1015 = vunpack.c.l.b16 %v1007
    %v1016 = vunpack.c.l.b16 %v1008
    %v1017 = vunpack.c.l.b16 %v1009
    %v1018 = vpack.c.b16 %v1015, %v1014
    %v1019 = vpack.c.b16 %v1017, %v1016
    %1022 = vmatpush.bf16.msra.mxu0 0
    %1023 = vmatpush.bf16.msra.mxu0 0
    %1024 = vmatpush.bf16.msra.mxu0 0
    %1025 = vmatpush.bf16.msra.mxu0 0
    %1026 = vmatpush.bf16.msra.mxu0 0
    %1027 = vmatpush.bf16.msra.mxu0 0
    %1028 = vmatpush.bf16.msra.mxu0 %v1019
    %1029 = vmatpush.bf16.msra.mxu0 %v1018
    %1030 = vmatmul.bf16.gmra.mxu0 %v948
    %v1031 = vpop.f32.mrf.mxu0
    %v1032 = vadd.f32 0.0, %v1031
    %v1033 = vpop.f32.mrf.mxu0
    %v1034 = vadd.f32 0.0, %v1033
    %1035 = vdwg.mxu0
    %v1036 = vmul.f32 %v960, %v171
    %v1037 = vmul.f32 %v962, %v172
    %v1038 = vmul.f32 %v965, %v173
    %v1039 = vmul.f32 %v967, %v174
    %v1040 = vmul.f32 %v960, %v175
    %v1041 = vmul.f32 %v962, %v176
    %v1042 = vmul.f32 %v965, %v177
    %v1043 = vmul.f32 %v967, %v178
    %v1044 = vmul.f32 %v960, %v179
    %v1045 = vmul.f32 %v962, %v180
    %v1046 = vmul.f32 %v965, %v181
    %v1047 = vmul.f32 %v967, %v182
    %v1048 = vmul.f32 %v960, %v183
    %v1049 = vmul.f32 %v962, %v184
    %v1050 = vmul.f32 %v965, %v185
    %v1051 = vmul.f32 %v967, %v186
    %v1052 = vpack.c.bf16 %v1037, %v1036
    %v1053 = vpack.c.bf16 %v1039, %v1038
    %v1054 = vpack.c.bf16 %v1041, %v1040
    %v1055 = vpack.c.bf16 %v1043, %v1042
    %v1056 = vpack.c.bf16 %v1045, %v1044
    %v1057 = vpack.c.bf16 %v1047, %v1046
    %v1058 = vpack.c.bf16 %v1049, %v1048
    %v1059 = vpack.c.bf16 %v1051, %v1050
    %v1060 = vmul.f32 %v996, %v171
    %v1061 = vmul.f32 %v998, %v172
    %v1062 = vmul.f32 %v1001, %v173
    %v1063 = vmul.f32 %v1003, %v174
    %v1064 = vmul.f32 %v996, %v175
    %v1065 = vmul.f32 %v998, %v176
    %v1066 = vmul.f32 %v1001, %v177
    %v1067 = vmul.f32 %v1003, %v178
    %v1068 = vmul.f32 %v996, %v179
    %v1069 = vmul.f32 %v998, %v180
    %v1070 = vmul.f32 %v1001, %v181
    %v1071 = vmul.f32 %v1003, %v182
    %v1072 = vmul.f32 %v996, %v183
    %v1073 = vmul.f32 %v998, %v184
    %v1074 = vmul.f32 %v1001, %v185
    %v1075 = vmul.f32 %v1003, %v186
    %v1076 = vpack.c.bf16 %v1061, %v1060
    %v1077 = vpack.c.bf16 %v1063, %v1062
    %v1078 = vpack.c.bf16 %v1065, %v1064
    %v1079 = vpack.c.bf16 %v1067, %v1066
    %v1080 = vpack.c.bf16 %v1069, %v1068
    %v1081 = vpack.c.bf16 %v1071, %v1070
    %v1082 = vpack.c.bf16 %v1073, %v1072
    %v1083 = vpack.c.bf16 %v1075, %v1074
    %v1084 = vpack.c.bf16 %v1034, %v1032
    %1087 = vrot.lane.b32.xlu0 %v1032, 32
    %v1088 = vpop.permute.xlu0 %1087
    %1089 = vrot.lane.b32.xlu0 %v1034, 32
    %v1090 = vpop.permute.xlu0 %1089
    %1093 = vrot.lane.b32.xlu0 %v1032, 64
    %v1094 = vpop.permute.xlu0 %1093
    %1095 = vrot.lane.b32.xlu0 %v1034, 64
    %v1096 = vpop.permute.xlu0 %1095
    %1099 = vrot.lane.b32.xlu0 %v1032, 96
    %v1100 = vpop.permute.xlu0 %1099
    %1101 = vrot.lane.b32.xlu0 %v1034, 96
    %v1102 = vpop.permute.xlu0 %1101
    %v1105 = vsel %vm247, %v1032, %v1088
    %v1106 = vsel %vm247, %v1034, %v1090
    %v1107 = vsel %vm443, %v1105, %v1094
    %v1108 = vsel %vm443, %v1106, %v1096
    %v1109 = vsel %vm446, %v1107, %v1100
    %v1110 = vsel %vm446, %v1108, %v1102
    %v1111 = vmul.f32 %v1109, %v195
    %v1112 = vmul.f32 %v1109, %v196
    %v1113 = vmul.f32 %v1110, %v197
    %v1114 = vmul.f32 %v1110, %v198
    %v1115 = vpack.c.bf16 %v1113, %v1111
    %v1116 = vpack.c.bf16 %v1114, %v1112
    %1117 = vmatpush.bf16.msra.mxu0 %v526
    %1118 = vmatpush.bf16.msra.mxu0 %v525
    %1119 = vmatpush.bf16.msra.mxu0 %v524
    %1120 = vmatpush.bf16.msra.mxu0 %v523
    %1121 = vmatpush.bf16.msra.mxu0 %v522
    %1122 = vmatpush.bf16.msra.mxu0 %v521
    %1123 = vmatpush.bf16.msra.mxu0 %v520
    %1124 = vmatpush.bf16.msra.mxu0 %v519
    %1125 = vmatmul.bf16.gmra.mxu0 %v1115
    %v1126 = vpop.f32.mrf.mxu0
    %v1127 = vadd.f32 0.0, %v1126
    %v1128 = vpop.f32.mrf.mxu0
    %v1129 = vadd.f32 0.0, %v1128
    %1130 = vdwg.mxu0
    %1131 = vmatpush.bf16.msra.mxu0 %v534
    %1132 = vmatpush.bf16.msra.mxu0 %v533
    %1133 = vmatpush.bf16.msra.mxu0 %v532
    %1134 = vmatpush.bf16.msra.mxu0 %v531
    %1135 = vmatpush.bf16.msra.mxu0 %v530
    %1136 = vmatpush.bf16.msra.mxu0 %v529
    %1137 = vmatpush.bf16.msra.mxu0 %v528
    %1138 = vmatpush.bf16.msra.mxu0 %v527
    %1139 = vmatmul.bf16.gmra.mxu0 %v1116
    %v1140 = vpop.f32.mrf.mxu0
    %v1141 = vadd.f32 %v1127, %v1140
    %v1142 = vpop.f32.mrf.mxu0
    %v1143 = vadd.f32 %v1129, %v1142
    %1144 = vdwg.mxu0
    %v1146 = vsel %vm247, %v1084, 0
    %v1149 = vsel %vm247, %v1052, 0
    %v1152 = vsel %vm247, %v1053, 0
    %v1155 = vsel %vm247, %v1054, 0
    %v1158 = vsel %vm247, %v1055, 0
    %v1161 = vsel %vm247, %v1056, 0
    %v1164 = vsel %vm247, %v1057, 0
    %v1167 = vsel %vm247, %v1058, 0
    %v1170 = vsel %vm247, %v1059, 0
    %1172 = vmatpush.bf16.xpose.msra.mxu0 %v1170
    %1173 = vmatpush.bf16.xpose.msra.mxu0 %v1167
    %1174 = vmatpush.bf16.xpose.msra.mxu0 %v1164
    %1175 = vmatpush.bf16.xpose.msra.mxu0 %v1161
    %1176 = vmatpush.bf16.xpose.msra.mxu0 %v1158
    %1177 = vmatpush.bf16.xpose.msra.mxu0 %v1155
    %1178 = vmatpush.bf16.xpose.msra.mxu0 %v1152
    %1179 = vmatpush.bf16.xpose.msra.mxu0 %v1149
    %1180 = vmatmul.bf16.gmra.mxu0 %v1146
    %v1181 = vpop.f32.mrf.mxu0
    %v1182 = vadd.f32 %v1141, %v1181
    %v1183 = vpop.f32.mrf.mxu0
    %v1184 = vadd.f32 %v1143, %v1183
    %1185 = vdwg.mxu0
    %v1186 = vadd.f32 %v1182, %v243
    %v1187 = vadd.f32 %v1184, %v244
    %v1188 = vmul.f32 %v1186, 0.35355338
    %v1189 = vmul.f32 %v1187, 0.35355338
    %1190 = vmax.xlane.f32.xlu0 %v1188
    %v1191 = vpop.xlane.xlu0 %1190
    %1192 = vmax.xlane.f32.xlu0 %v1189
    %v1193 = vpop.xlane.xlu0 %1192
    %v1194 = vsub.f32 %v1188, %v1191
    %v1195 = vsub.f32 %v1189, %v1193
    %v1196 = vmul.f32 %v1194, 1.442695
    %v1197 = vpow.pop %v1196
    %v1198 = vmul.f32 %v1195, 1.442695
    %v1199 = vpow.pop %v1198
    %v1200 = vpack.c.bf16 %v1199, %v1197
    %1201 = vmatpush.bf16.msra.mxu0 %v1083
    %1202 = vmatpush.bf16.msra.mxu0 %v1082
    %1203 = vmatpush.bf16.msra.mxu0 %v1081
    %1204 = vmatpush.bf16.msra.mxu0 %v1080
    %1205 = vmatpush.bf16.msra.mxu0 %v1079
    %1206 = vmatpush.bf16.msra.mxu0 %v1078
    %1207 = vmatpush.bf16.msra.mxu0 %v1077
    %1208 = vmatpush.bf16.msra.mxu0 %v1076
    %1209 = vmatmul.bf16.gmra.mxu0 %v1200
    %v1210 = vpop.f32.mrf.mxu0
    %v1211 = vadd.f32 0.0, %v1210
    %v1212 = vpop.f32.mrf.mxu0
    %v1213 = vadd.f32 0.0, %v1212
    %1214 = vdwg.mxu0
    %1215 = vmatpush.bf16.msra.mxu0 %v194
    %1216 = vmatpush.bf16.msra.mxu0 %v193
    %1217 = vmatpush.bf16.msra.mxu0 %v192
    %1218 = vmatpush.bf16.msra.mxu0 %v191
    %1219 = vmatpush.bf16.msra.mxu0 %v190
    %1220 = vmatpush.bf16.msra.mxu0 %v189
    %1221 = vmatpush.bf16.msra.mxu0 %v188
    %1222 = vmatpush.bf16.msra.mxu0 %v187
    %1223 = vmatmul.bf16.gmra.mxu0 %v1200
    %v1224 = vpop.f32.mrf.mxu0
    %v1225 = vadd.f32 0.0, %v1224
    %v1226 = vpop.f32.mrf.mxu0
    %v1227 = vadd.f32 0.0, %v1226
    %1228 = vdwg.mxu0
    %v1229 = vrcp.pop %v1225
    %v1230 = vrcp.pop %v1227
    %v1231 = vmul.f32 %v1211, %v1229
    %v1232 = vmul.f32 %v1213, %v1230
    %v1233 = vpack.c.bf16 %v1232, %v1231
    %s1234 = scalar_lea.vmem %s6, 16
    %v1235 = vld [vmem:[%s1234] sm:$0xf]
    %v1236 = vld [vmem:[%s1234 + $0x4] sm:$0xf]
    %v1237 = vld [vmem:[%s1234 + $0x8] sm:$0xf]
    %v1238 = vld [vmem:[%s1234 + $0xc] sm:$0xf]
    %v1243 = vunpack.c.l.b16 %v1235
    %v1244 = vunpack.c.l.b16 %v1236
    %v1245 = vunpack.c.l.b16 %v1237
    %v1246 = vunpack.c.l.b16 %v1238
    %v1247 = vpack.c.b16 %v1244, %v1243
    %v1248 = vpack.c.b16 %v1246, %v1245
    %v1252 = vsel %vm247, %v1233, 0
    %1254 = vmatpush.bf16.msra.mxu0 0
    %1255 = vmatpush.bf16.msra.mxu0 0
    %1256 = vmatpush.bf16.msra.mxu0 0
    %1257 = vmatpush.bf16.msra.mxu0 0
    %1258 = vmatpush.bf16.msra.mxu0 0
    %1259 = vmatpush.bf16.msra.mxu0 0
    %1260 = vmatpush.bf16.msra.mxu0 %v1248
    %1261 = vmatpush.bf16.msra.mxu0 %v1247
    %1262 = vmatmul.bf16.gmra.mxu0 %v1252
    %v1263 = vpop.f32.mrf.mxu0
    %v1264 = vadd.f32 0.0, %v1263
    %v1265 = vpop.f32.mrf.mxu0
    %v1266 = vadd.f32 0.0, %v1265
    %1267 = vdwg.mxu0
    %s1268 = scalar_lea.vmem [#allocation5], 4
    %v1269 = vld [vmem:[%s1268] sm:$0xf]
    %v1270 = vadd.f32 %v905, %v1264
    %v1271 = vadd.f32 %v906, %v1266
    %v1272 = vsel %vm247, %v1270, 0.0
    %1273 = vadd.xlane.f32.xlu0 %v1272
    %v1274 = vpop.xlane.xlu0 %1273
    %v1275 = vsel %vm247, %v1271, 0.0
    %1276 = vadd.xlane.f32.xlu0 %v1275
    %v1277 = vpop.xlane.xlu0 %1276
    %v1278 = vmul.f32 %v1274, %v716
    %v1279 = vmul.f32 %v1277, %v716
    %v1280 = vsub.f32 %v1270, %v1278
    %v1281 = vsub.f32 %v1271, %v1279
    %v1282 = vmul.f32 %v1280, %v1280
    %v1283 = vmul.f32 %v1281, %v1281
    %v1284 = vsel %vm247, %v1282, 0.0
    %1285 = vadd.xlane.f32.xlu0 %v1284
    %v1286 = vpop.xlane.xlu0 %1285
    %v1287 = vsel %vm247, %v1283, 0.0
    %1288 = vadd.xlane.f32.xlu0 %v1287
    %v1289 = vpop.xlane.xlu0 %1288
    %v1290 = vmul.f32 %v1286, %v716
    %v1291 = vmul.f32 %v1289, %v716
    %v1292 = vadd.f32 %v1290, 1e-05
    %v1293 = vadd.f32 %v1291, 1e-05
    %v1294 = vrsqrt.pop %v1292
    %v1295 = vmul.f32 %v1294, %v1292
    %v1296 = vmul.f32 %v1295, %v1294
    %v1297 = vmul.f32 0.5, %v1296
    %v1298 = vsub.f32 1.5, %v1297
    %v1299 = vmul.f32 %v1294, %v1298
    %vm1300 = vweird.f32 %v1292
    %vm1301 = vweird.f32 %v1294
    %vm1302 = vmor %vm1300, %vm1301
    %v1303 = vsel %vm1302, %v1294, %v1299
    %v1304 = vrsqrt.pop %v1293
    %v1305 = vmul.f32 %v1304, %v1293
    %v1306 = vmul.f32 %v1305, %v1304
    %v1307 = vmul.f32 0.5, %v1306
    %v1308 = vsub.f32 1.5, %v1307
    %v1309 = vmul.f32 %v1304, %v1308
    %vm1310 = vweird.f32 %v1293
    %vm1311 = vweird.f32 %v1304
    %vm1312 = vmor %vm1310, %vm1311
    %v1313 = vsel %vm1312, %v1304, %v1309
    %v1314 = vmul.f32 %v1280, %v1303
    %v1315 = vmul.f32 %v1281, %v1313
    %v1316 = vperm.slane %v1269, 0
    %v1317 = vmul.f32 %v1314, %v1316
    %v1318 = vmul.f32 %v1315, %v1316
    %v1319 = vperm.slane %v1269, 1
    %v1320 = vadd.f32 %v1317, %v1319
    %v1321 = vadd.f32 %v1318, %v1319
    %v1322 = vpack.c.bf16 %v1321, %v1320
    %s1323 = scalar_lea.vmem %s8, 16
    %v1324 = vld [vmem:[%s1323] sm:$0xf]
    %v1325 = vld [vmem:[%s1323 + $0x4] sm:$0xf]
    %v1326 = vld [vmem:[%s1323 + $0x8] sm:$0xf]
    %v1327 = vld [vmem:[%s1323 + $0xc] sm:$0xf]
    %s1328 = scalar_lea.vmem %s9, 1
    %v1329 = vld [vmem:[%s1328] sm:$0x1]
    %v1331 = vperm.slane %v1329, 0
    %v1337 = vunpack.c.l.b16 %v1324
    %v1338 = vunpack.c.l.b16 %v1325
    %v1339 = vunpack.c.l.b16 %v1326
    %v1340 = vunpack.c.l.b16 %v1327
    %v1341 = vpack.c.b16 %v1338, %v1337
    %v1342 = vpack.c.b16 %v1340, %v1339
    %v1346 = vsel %vm247, %v1322, 0
    %1348 = vmatpush.bf16.msra.mxu0 0
    %1349 = vmatpush.bf16.msra.mxu0 0
    %1350 = vmatpush.bf16.msra.mxu0 0
    %1351 = vmatpush.bf16.msra.mxu0 0
    %1352 = vmatpush.bf16.msra.mxu0 0
    %1353 = vmatpush.bf16.msra.mxu0 0
    %1354 = vmatpush.bf16.msra.mxu0 %v1342
    %1355 = vmatpush.bf16.msra.mxu0 %v1341
    %1356 = vmatmul.bf16.gmra.mxu0 %v1346
    %v1357 = vpop.f32.mrf.mxu0
    %v1358 = vadd.f32 %v1331, %v1357
    %v1359 = vpop.f32.mrf.mxu0
    %v1360 = vadd.f32 %v1331, %v1359
    %1361 = vdwg.mxu0
    %v1362 = vmax.f32 %v1358, 0.0
    %v1363 = vmax.f32 %v1360, 0.0
    %v1364 = vpack.c.bf16 %v1363, %v1362
    %s1365 = scalar_lea.vmem %s10, 32
    %v1366 = vld [vmem:[%s1365] sm:$0xf]
    %v1367 = vld [vmem:[%s1365 + $0x4] sm:$0xf]
    %v1368 = vld [vmem:[%s1365 + $0x8] sm:$0xf]
    %v1369 = vld [vmem:[%s1365 + $0xc] sm:$0xf]
    %v1370 = vld [vmem:[%s1365 + $0x10] sm:$0xf]
    %v1371 = vld [vmem:[%s1365 + $0x14] sm:$0xf]
    %v1372 = vld [vmem:[%s1365 + $0x18] sm:$0xf]
    %v1373 = vld [vmem:[%s1365 + $0x1c] sm:$0xf]
    %s1374 = scalar_lea.vmem [#allocation3], 1
    %v1375 = vld [vmem:[%s1374] sm:$0x1]
    %v1377 = vperm.slane %v1375, 0
    %v1387 = vunpack.c.l.b16 %v1366
    %v1388 = vunpack.c.l.b16 %v1367
    %v1389 = vunpack.c.l.b16 %v1368
    %v1390 = vunpack.c.l.b16 %v1369
    %v1391 = vunpack.c.l.b16 %v1370
    %v1392 = vunpack.c.l.b16 %v1371
    %v1393 = vunpack.c.l.b16 %v1372
    %v1394 = vunpack.c.l.b16 %v1373
    %v1395 = vpack.c.b16 %v1388, %v1387
    %v1396 = vpack.c.b16 %v1390, %v1389
    %v1397 = vpack.c.b16 %v1392, %v1391
    %v1398 = vpack.c.b16 %v1394, %v1393
    %v1404 = vsel %vm443, %v1364, 0
    %1406 = vmatpush.bf16.msra.mxu0 0
    %1407 = vmatpush.bf16.msra.mxu0 0
    %1408 = vmatpush.bf16.msra.mxu0 0
    %1409 = vmatpush.bf16.msra.mxu0 0
    %1410 = vmatpush.bf16.msra.mxu0 %v1398
    %1411 = vmatpush.bf16.msra.mxu0 %v1397
    %1412 = vmatpush.bf16.msra.mxu0 %v1396
    %1413 = vmatpush.bf16.msra.mxu0 %v1395
    %1414 = vmatmul.bf16.gmra.mxu0 %v1404
    %v1415 = vpop.f32.mrf.mxu0
    %v1416 = vadd.f32 %v1377, %v1415
    %v1417 = vpop.f32.mrf.mxu0
    %v1418 = vadd.f32 %v1377, %v1417
    %1419 = vdwg.mxu0
    %v1420 = vadd.f32 %v1320, %v1416
    %v1421 = vadd.f32 %v1321, %v1418
    %v1422 = vsel %vm247, %v1420, 0.0
    %1423 = vadd.xlane.f32.xlu0 %v1422
    %v1424 = vpop.xlane.xlu0 %1423
    %v1425 = vsel %vm247, %v1421, 0.0
    %1426 = vadd.xlane.f32.xlu0 %v1425
    %v1427 = vpop.xlane.xlu0 %1426
    %v1428 = vmul.f32 %v1424, %v716
    %v1429 = vmul.f32 %v1427, %v716
    %v1430 = vsub.f32 %v1420, %v1428
    %v1431 = vsub.f32 %v1421, %v1429
    %v1432 = vmul.f32 %v1430, %v1430
    %v1433 = vmul.f32 %v1431, %v1431
    %v1434 = vsel %vm247, %v1432, 0.0
    %1435 = vadd.xlane.f32.xlu0 %v1434
    %v1436 = vpop.xlane.xlu0 %1435
    %v1437 = vsel %vm247, %v1433, 0.0
    %1438 = vadd.xlane.f32.xlu0 %v1437
    %v1439 = vpop.xlane.xlu0 %1438
    %v1440 = vmul.f32 %v1436, %v716
    %v1441 = vmul.f32 %v1439, %v716
    %v1442 = vadd.f32 %v1440, 1e-05
    %v1443 = vadd.f32 %v1441, 1e-05
    %v1444 = vrsqrt.pop %v1442
    %v1445 = vmul.f32 %v1444, %v1442
    %v1446 = vmul.f32 %v1445, %v1444
    %v1447 = vmul.f32 0.5, %v1446
    %v1448 = vsub.f32 1.5, %v1447
    %v1449 = vmul.f32 %v1444, %v1448
    %vm1450 = vweird.f32 %v1442
    %vm1451 = vweird.f32 %v1444
    %vm1452 = vmor %vm1450, %vm1451
    %v1453 = vsel %vm1452, %v1444, %v1449
    %v1454 = vrsqrt.pop %v1443
    %v1455 = vmul.f32 %v1454, %v1443
    %v1456 = vmul.f32 %v1455, %v1454
    %v1457 = vmul.f32 0.5, %v1456
    %v1458 = vsub.f32 1.5, %v1457
    %v1459 = vmul.f32 %v1454, %v1458
    %vm1460 = vweird.f32 %v1443
    %vm1461 = vweird.f32 %v1454
    %vm1462 = vmor %vm1460, %vm1461
    %v1463 = vsel %vm1462, %v1454, %v1459
    %v1464 = vmul.f32 %v1430, %v1453
    %v1465 = vmul.f32 %v1431, %v1463
    %v1466 = vperm.slane %v1269, 2
    %v1467 = vmul.f32 %v1464, %v1466
    %v1468 = vmul.f32 %v1465, %v1466
    %v1469 = vperm.slane %v1269, 3
    %v1470 = vadd.f32 %v1467, %v1469
    %v1471 = vadd.f32 %v1468, %v1469
    %v1472 = vpack.c.bf16 %v1471, %v1470
    %v1473 = vld [vmem:[#allocation11] sm:$0xf]
    %v1474 = vld [vmem:[#allocation11 + $0x4] sm:$0xf]
    %v1475 = vld [vmem:[#allocation11 + $0x8] sm:$0xf]
    %v1476 = vld [vmem:[#allocation11 + $0xc] sm:$0xf]
    %v1477 = vld [vmem:[#allocation13] sm:$0x1]
    %v1479 = vperm.slane %v1477, 0
    %v1485 = vunpack.c.l.b16 %v1473
    %v1486 = vunpack.c.l.b16 %v1474
    %v1487 = vunpack.c.l.b16 %v1475
    %v1488 = vunpack.c.l.b16 %v1476
    %v1489 = vpack.c.b16 %v1486, %v1485
    %v1490 = vpack.c.b16 %v1488, %v1487
    %v1494 = vsel %vm247, %v1472, 0
    %1496 = vmatpush.bf16.msra.mxu0 0
    %1497 = vmatpush.bf16.msra.mxu0 0
    %1498 = vmatpush.bf16.msra.mxu0 0
    %1499 = vmatpush.bf16.msra.mxu0 0
    %1500 = vmatpush.bf16.msra.mxu0 0
    %1501 = vmatpush.bf16.msra.mxu0 0
    %1502 = vmatpush.bf16.msra.mxu0 %v1490
    %1503 = vmatpush.bf16.msra.mxu0 %v1489
    %1504 = vmatmul.bf16.gmra.mxu0 %v1494
    %v1505 = vpop.f32.mrf.mxu0
    %v1506 = vadd.f32 %v1479, %v1505
    %v1507 = vpop.f32.mrf.mxu0
    %v1508 = vadd.f32 %v1479, %v1507
    %1509 = vdwg.mxu0
    %1510 = vmax.xlane.f32.xlu0 %v1506
    %v1511 = vpop.xlane.xlu0 %1510
    %1512 = vmax.xlane.f32.xlu0 %v1508
    %v1513 = vpop.xlane.xlu0 %1512
    %v1514 = vsub.f32 %v1506, %v1511
    %v1515 = vsub.f32 %v1508, %v1513
    %v1516 = vmul.f32 %v1514, 1.442695
    %v1517 = vpow.pop %v1516
    %v1518 = vmul.f32 %v1515, 1.442695
    %v1519 = vpow.pop %v1518
    %1520 = vadd.xlane.f32.xlu0 %v1517
    %v1521 = vpop.xlane.xlu0 %1520
    %1522 = vadd.xlane.f32.xlu0 %v1519
    %v1523 = vpop.xlane.xlu0 %1522
    %v1524 = vlog2.pop %v1521
    %v1525 = vmul.f32 %v1524, 0.6931472
    %v1526 = vlog2.pop %v1523
    %v1527 = vmul.f32 %v1526, 0.6931472
    %v1528 = vadd.f32 %v1511, %v1525
    %v1529 = vadd.f32 %v1513, %v1527
    %v1530 = vsub.f32 %v1506, %v1528
    %v1531 = vsub.f32 %v1508, %v1529
    %1532 = vst [vmem:[%s19] sm:$0xff] %v1530
    %1533 = vst [vmem:[%s19 + $0x8] sm:$0xff] %v1531
    // Predicated region
    $region106: #{transformer_forward.1} parent=1 // pred_check
      _
    $region107: #{transformer_forward.1} parent=1 // pred_check_branch
      %1535 = sbr.rel (0) target = $region109
    $region108: #{transformer_forward.1} parent=1 // pred_region
      _
    $region109: #{transformer_forward.1} parent=1 // pred_fallthru
      _
    // Predicated region
    $region110: #{transformer_forward.1} parent=1 // pred_check
      _
    $region111: #{transformer_forward.1} parent=1 // pred_check_branch
      %1537 = sbr.rel (0) target = $region113
    $region112: #{transformer_forward.1} parent=1 // pred_region
      _
    $region113: #{transformer_forward.1} parent=1 // pred_fallthru
      _
    // Predicated region
    $region114: #{transformer_forward.1} parent=1 // pred_check
      _
    $region115: #{transformer_forward.1} parent=1 // pred_check_branch
      %1539 = sbr.rel (0) target = $region117
    $region116: #{transformer_forward.1} parent=1 // pred_region
      _
    $region117: #{transformer_forward.1} parent=1 // pred_fallthru
      _
    // Predicated region
    $region118: #{transformer_forward.1} parent=1 // pred_check
      _
    $region119: #{transformer_forward.1} parent=1 // pred_check_branch
      %1541 = sbr.rel (0) target = $region121
    $region120: #{transformer_forward.1} parent=1 // pred_region
      _
    $region121: #{transformer_forward.1} parent=1 // pred_fallthru
      _
    %1542 = vsyncpa [#allocation4], 1
    %1543 = vsyncpa [#allocation6], 1
    %1544 = vsyncpa [#allocation9], 1
    %1545 = vsyncpa [#allocation12], 1

</llo_original>
